<compile_context>
chip_gen: v7x
topology: tpu7x:2x2x1
jax: 0.10.0
libtpu: 0.0.40
codegen_flags: <defaults>
</compile_context>

<pallas_src>
import jax
import jax.numpy as jnp
from jax.experimental import pallas as pl
from jax.experimental.pallas import tpu as pltpu


def mynet_kernel(x_ref, lw_ref, cw_ref, cb_ref, lb_ref, o_ref):
    # x_ref:  (C_in, HW, TB)   activations; samples on the 128-lane axis
    # lw_ref: (HW, C_out)      permuted linear weight (VMEM, resident)
    # cw_ref: (C_in*C_out,)    1x1 conv weight, index [c*C_out + o] (SMEM)
    # cb_ref: (C_out,)         conv bias (SMEM scalars)
    # lb_ref: (1,)             linear bias (SMEM scalar)
    # o_ref:  (1, TB)          lane-dense per-sample logits for this tile
    c_in = x_ref.shape[0]
    c_out = lw_ref.shape[1]

    acc = None
    for o in range(c_out):                            # 5 output channels, unrolled
        # 1x1 conv for output channel o: sum_c x[c] * w[c, o]  (SMEM-scalar FMAs).
        y = None
        for c in range(c_in):
            term = x_ref[c] * cw_ref[c * c_out + o]
            y = term if y is None else y + term
        y = jnp.maximum(y + cb_ref[o], 0.0)           # + conv bias, ReLU
        # Weight by the linear row for channel o (size-1 lane broadcast of the
        # (HW, 1) column) and reduce over pixels (sublane axis) immediately.
        part = jnp.sum(y * lw_ref[:, o:o + 1], axis=0, keepdims=True)   # (1, TB)
        acc = part if acc is None else acc + part

    o_ref[...] = acc + lb_ref[0]                      # + linear bias


def mynet_forward(x, conv_w, conv_b, lin_w, lin_b, block_n=2048):
    """x: (N, W, H, C_in), exactly as passed to the PyTorch module's forward."""
    N, W, H, C = x.shape
    HW = H * W
    C_OUT = conv_w.shape[0]  # 5

    def ceil_to(v, m):
        return ((v + m - 1) // m) * m

    # Balanced, lane-aligned sample blocks (samples sit on the 128-lane axis).
    block_n = max(128, ceil_to(block_n, 128))
    grid_n = max(1, -(-N // block_n))
    tb = ceil_to(-(-N // grid_n), 128)
    # v7x has two TensorCores: give the "parallel" grid axis >= 2 steps when
    # there is enough work to split (neutral on v5e/v6e).
    if grid_n == 1 and tb >= 256:
        grid_n = 2
        tb = ceil_to(-(-N // 2), 128)
    n_pad = grid_n * tb

    # Channel-major, sample-minor repack: (N, W, H, C) -> (C, W*H, N) with
    # pixel index p = w*H + h.  The W/H swap PyTorch's NCHW flatten implies is
    # folded into lw_2d below instead of touching the activations.
    # TODO(synk): this repack is one extra full HBM pass in front of an
    # HBM-bound kernel (worst on v5e); produce/store activations channel-major
    # upstream (or fuse the transpose into the operand) to remove it.
    x_c = jnp.transpose(x, (3, 1, 2, 0)).reshape(C, HW, N).astype(jnp.float32)
    if n_pad != N:
        x_c = jnp.pad(x_c, ((0, 0), (0, 0), (0, n_pad - N)))

    # Small params as flat f32 SMEM scalars.
    cw_flat = jnp.asarray(conv_w, jnp.float32).reshape(C_OUT, C).T.reshape(-1)  # [c*C_OUT+o]
    cb_flat = jnp.asarray(conv_b, jnp.float32).reshape(C_OUT)
    lb_flat = jnp.asarray(lin_b, jnp.float32).reshape(1)
    # PyTorch flatten of (N, C_out, H, W) is index o*H*W + h*W + w; our pixel
    # index is p = w*H + h -> permute (H, W)->(W, H), lay out as (HW, C_out)
    # so column o lane-broadcasts over the sample axis in the kernel.
    lw_2d = jnp.transpose(jnp.asarray(lin_w, jnp.float32).reshape(C_OUT, H, W),
                          (0, 2, 1)).reshape(C_OUT, HW).T                       # (HW, C_OUT)

    tile_bytes = C * HW * tb * 4
    vmem_limit = int(max(32 << 20, 2 * tile_bytes + (4 << 20)))

    out = pl.pallas_call(
        mynet_kernel,
        out_shape=jax.ShapeDtypeStruct((grid_n, tb), jnp.float32),
        grid_spec=pltpu.PrefetchScalarGridSpec(
            num_scalar_prefetch=0,
            grid=(grid_n,),
            in_specs=[
                pl.BlockSpec((C, HW, tb), lambda g: (0, 0, g)),        # activations
                pl.BlockSpec((HW, C_OUT), lambda g: (0, 0)),           # linear weight (VMEM)
                pl.BlockSpec(memory_space=pltpu.MemorySpace.SMEM),     # conv weight
                pl.BlockSpec(memory_space=pltpu.MemorySpace.SMEM),     # conv bias
                pl.BlockSpec(memory_space=pltpu.MemorySpace.SMEM),     # linear bias
            ],
            out_specs=pl.BlockSpec((1, tb), lambda g: (g, 0)),         # lane-dense logits
        ),
        compiler_params=pltpu.CompilerParams(
            dimension_semantics=("parallel",),
            vmem_limit_bytes=vmem_limit),
    )(x_c, lw_2d, cw_flat, cb_flat, lb_flat)

    # Row g of `out` holds samples [g*tb, (g+1)*tb); padded tail is sliced off.
    return out.reshape(-1)[:N].reshape(N, 1)


def ref_forward(x, conv_w, conv_b, lin_w, lin_b):
    """Pure-JAX reference mirroring the PyTorch module exactly (f32-accurate)."""
    N, W, H, C = x.shape
    c_out = conv_w.shape[0]
    xn = jnp.transpose(x, (0, 3, 2, 1))                          # torch transpose(1,3): (N,C,H,W)
    y = jnp.einsum('oi,nihw->nohw', conv_w.reshape(c_out, C), xn,
                   precision=jax.lax.Precision.HIGHEST)
    y = jnp.maximum(y + conv_b.reshape(1, c_out, 1, 1), 0.0)
    flat = y.reshape(N, -1)                                      # (N, 5*H*W)
    return jnp.dot(flat, lin_w.T, precision=jax.lax.Precision.HIGHEST) + lin_b


if __name__ == "__main__":
    # Small shapes consistent with the module: w = h = 16, num_in_channels = 3.
    N, Wd, Hd, Cin, Cout = 2, 16, 16, 3, 5

    key = jax.random.PRNGKey(0)
    kx, kcw, kcb, klw, klb = jax.random.split(key, 5)

    x = jax.random.normal(kx, (N, Wd, Hd, Cin), dtype=jnp.float32)
    conv_w = jax.random.normal(kcw, (Cout, Cin, 1, 1), dtype=jnp.float32) * 0.1
    conv_b = jax.random.normal(kcb, (Cout,), dtype=jnp.float32) * 0.1
    lin_w = jax.random.normal(klw, (1, Cout * Hd * Wd), dtype=jnp.float32) * 0.02
    lin_b = jax.random.normal(klb, (1,), dtype=jnp.float32) * 0.1

    logits = jax.block_until_ready(mynet_forward(x, conv_w, conv_b, lin_w, lin_b))
    ref = ref_forward(x, conv_w, conv_b, lin_w, lin_b)
    assert logits.shape == (N, 1)
    assert jnp.allclose(logits, ref, rtol=1e-4, atol=1e-4), (logits, ref)

    # Multi-tile path: N not a multiple of the block -> padding and grid > 1.
    N2 = 300
    x2 = jax.random.normal(jax.random.PRNGKey(1), (N2, Wd, Hd, Cin), jnp.float32)
    logits2 = jax.block_until_ready(
        mynet_forward(x2, conv_w, conv_b, lin_w, lin_b, block_n=128))
    ref2 = ref_forward(x2, conv_w, conv_b, lin_w, lin_b)
    assert logits2.shape == (N2, 1)
    assert jnp.allclose(logits2, ref2, rtol=1e-4, atol=1e-4), (logits2, ref2)

    # Non-square spatial dims + the two-step (v7x megacore) split path.
    N3, W3, H3 = 256, 8, 16
    k3 = jax.random.split(jax.random.PRNGKey(2), 5)
    x3 = jax.random.normal(k3[0], (N3, W3, H3, Cin), jnp.float32)
    cw3 = jax.random.normal(k3[1], (Cout, Cin, 1, 1), jnp.float32) * 0.1
    cb3 = jax.random.normal(k3[2], (Cout,), jnp.float32) * 0.1
    lw3 = jax.random.normal(k3[3], (1, Cout * H3 * W3), jnp.float32) * 0.02
    lb3 = jax.random.normal(k3[4], (1,), jnp.float32) * 0.1
    logits3 = jax.block_until_ready(mynet_forward(x3, cw3, cb3, lw3, lb3))
    ref3 = ref_forward(x3, cw3, cb3, lw3, lb3)
    assert logits3.shape == (N3, 1)
    assert jnp.allclose(logits3, ref3, rtol=1e-4, atol=1e-4), (logits3, ref3)

    print("KERNEL_OK")
</pallas_src>

<mosaic_0001>
module attributes {stable_mosaic.version = 11 : i64} {
  func.func @mynet_kernel(%arg0: i32, %arg1: memref<3x256x128xf32, #tpu.memory_space<vmem>>, %arg2: memref<256x5xf32, #tpu.memory_space<vmem>>, %arg3: memref<15xf32, #tpu.memory_space<smem>>, %arg4: memref<5xf32, #tpu.memory_space<smem>>, %arg5: memref<1xf32, #tpu.memory_space<smem>>, %arg6: memref<1x128xf32, #tpu.memory_space<vmem>>) attributes {dimension_semantics = [#tpu.dimension_semantics<parallel>], iteration_bounds = array<i64: 1>, scalar_prefetch = 0 : i64, scratch_operands = 0 : i64, tpu.core_type = #tpu.core_type<tc>, window_params = [{transform_indices = @transform_0, window_bounds = array<i64: 3, 256, 128>}, {pipeline_mode = #tpu.pipeline_mode<synchronous>, transform_indices = @transform_1, window_bounds = array<i64: 256, 5>}, {transform_indices = @transform_2, window_bounds = array<i64: 15>}, {transform_indices = @transform_3, window_bounds = array<i64: 5>}, {transform_indices = @transform_4, window_bounds = array<i64: 1>}, {transform_indices = @transform_5, window_bounds = array<i64: 1, 128>}]} {
    %c0 = arith.constant 0 : index
    %c0_0 = arith.constant 0 : index
    %c0_1 = arith.constant 0 : index
    %0 = vector.load %arg1[%c0, %c0_0, %c0_1] : memref<3x256x128xf32, #tpu.memory_space<vmem>>, vector<1x256x128xf32>
    %1 = vector.shape_cast %0 : vector<1x256x128xf32> to vector<256x128xf32>
    %c0_2 = arith.constant 0 : index
    %2 = memref.load %arg3[%c0_2] : memref<15xf32, #tpu.memory_space<smem>>
    %3 = vector.broadcast %2 : f32 to vector<256x128xf32>
    %4 = arith.mulf %1, %3 : vector<256x128xf32>
    %c1 = arith.constant 1 : index
    %c0_3 = arith.constant 0 : index
    %c0_4 = arith.constant 0 : index
    %5 = vector.load %arg1[%c1, %c0_3, %c0_4] : memref<3x256x128xf32, #tpu.memory_space<vmem>>, vector<1x256x128xf32>
    %6 = vector.shape_cast %5 : vector<1x256x128xf32> to vector<256x128xf32>
    %c5 = arith.constant 5 : index
    %7 = memref.load %arg3[%c5] : memref<15xf32, #tpu.memory_space<smem>>
    %8 = vector.broadcast %7 : f32 to vector<256x128xf32>
    %9 = arith.mulf %6, %8 : vector<256x128xf32>
    %10 = arith.addf %4, %9 : vector<256x128xf32>
    %c2 = arith.constant 2 : index
    %c0_5 = arith.constant 0 : index
    %c0_6 = arith.constant 0 : index
    %11 = vector.load %arg1[%c2, %c0_5, %c0_6] : memref<3x256x128xf32, #tpu.memory_space<vmem>>, vector<1x256x128xf32>
    %12 = vector.shape_cast %11 : vector<1x256x128xf32> to vector<256x128xf32>
    %c10 = arith.constant 10 : index
    %13 = memref.load %arg3[%c10] : memref<15xf32, #tpu.memory_space<smem>>
    %14 = vector.broadcast %13 : f32 to vector<256x128xf32>
    %15 = arith.mulf %12, %14 : vector<256x128xf32>
    %16 = arith.addf %10, %15 : vector<256x128xf32>
    %c0_7 = arith.constant 0 : index
    %17 = memref.load %arg4[%c0_7] : memref<5xf32, #tpu.memory_space<smem>>
    %18 = vector.broadcast %17 : f32 to vector<256x128xf32>
    %19 = arith.addf %16, %18 : vector<256x128xf32>
    %cst = arith.constant 0.000000e+00 : f32
    %20 = vector.broadcast %cst : f32 to vector<256x128xf32>
    %21 = arith.maximumf %19, %20 : vector<256x128xf32>
    %c0_8 = arith.constant 0 : index
    %c0_9 = arith.constant 0 : index
    %22 = vector.load %arg2[%c0_8, %c0_9] : memref<256x5xf32, #tpu.memory_space<vmem>>, vector<256x1xf32>
    %23 = vector.broadcast %22 : vector<256x1xf32> to vector<256x128xf32>
    %24 = arith.mulf %21, %23 : vector<256x128xf32>
    %cst_10 = arith.constant dense<0.000000e+00> : vector<128xf32>
    %25 = vector.multi_reduction <add>, %24, %cst_10 [0] : vector<256x128xf32> to vector<128xf32>
    %26 = vector.shape_cast %25 : vector<128xf32> to vector<1x128xf32>
    %c0_11 = arith.constant 0 : index
    %c0_12 = arith.constant 0 : index
    %c0_13 = arith.constant 0 : index
    %27 = vector.load %arg1[%c0_11, %c0_12, %c0_13] : memref<3x256x128xf32, #tpu.memory_space<vmem>>, vector<1x256x128xf32>
    %28 = vector.shape_cast %27 : vector<1x256x128xf32> to vector<256x128xf32>
    %c1_14 = arith.constant 1 : index
    %29 = memref.load %arg3[%c1_14] : memref<15xf32, #tpu.memory_space<smem>>
    %30 = vector.broadcast %29 : f32 to vector<256x128xf32>
    %31 = arith.mulf %28, %30 : vector<256x128xf32>
    %c1_15 = arith.constant 1 : index
    %c0_16 = arith.constant 0 : index
    %c0_17 = arith.constant 0 : index
    %32 = vector.load %arg1[%c1_15, %c0_16, %c0_17] : memref<3x256x128xf32, #tpu.memory_space<vmem>>, vector<1x256x128xf32>
    %33 = vector.shape_cast %32 : vector<1x256x128xf32> to vector<256x128xf32>
    %c6 = arith.constant 6 : index
    %34 = memref.load %arg3[%c6] : memref<15xf32, #tpu.memory_space<smem>>
    %35 = vector.broadcast %34 : f32 to vector<256x128xf32>
    %36 = arith.mulf %33, %35 : vector<256x128xf32>
    %37 = arith.addf %31, %36 : vector<256x128xf32>
    %c2_18 = arith.constant 2 : index
    %c0_19 = arith.constant 0 : index
    %c0_20 = arith.constant 0 : index
    %38 = vector.load %arg1[%c2_18, %c0_19, %c0_20] : memref<3x256x128xf32, #tpu.memory_space<vmem>>, vector<1x256x128xf32>
    %39 = vector.shape_cast %38 : vector<1x256x128xf32> to vector<256x128xf32>
    %c11 = arith.constant 11 : index
    %40 = memref.load %arg3[%c11] : memref<15xf32, #tpu.memory_space<smem>>
    %41 = vector.broadcast %40 : f32 to vector<256x128xf32>
    %42 = arith.mulf %39, %41 : vector<256x128xf32>
    %43 = arith.addf %37, %42 : vector<256x128xf32>
    %c1_21 = arith.constant 1 : index
    %44 = memref.load %arg4[%c1_21] : memref<5xf32, #tpu.memory_space<smem>>
    %45 = vector.broadcast %44 : f32 to vector<256x128xf32>
    %46 = arith.addf %43, %45 : vector<256x128xf32>
    %cst_22 = arith.constant 0.000000e+00 : f32
    %47 = vector.broadcast %cst_22 : f32 to vector<256x128xf32>
    %48 = arith.maximumf %46, %47 : vector<256x128xf32>
    %c0_23 = arith.constant 0 : index
    %c1_24 = arith.constant 1 : index
    %49 = vector.load %arg2[%c0_23, %c1_24] : memref<256x5xf32, #tpu.memory_space<vmem>>, vector<256x1xf32>
    %50 = vector.broadcast %49 : vector<256x1xf32> to vector<256x128xf32>
    %51 = arith.mulf %48, %50 : vector<256x128xf32>
    %cst_25 = arith.constant dense<0.000000e+00> : vector<128xf32>
    %52 = vector.multi_reduction <add>, %51, %cst_25 [0] : vector<256x128xf32> to vector<128xf32>
    %53 = vector.shape_cast %52 : vector<128xf32> to vector<1x128xf32>
    %54 = arith.addf %26, %53 : vector<1x128xf32>
    %c0_26 = arith.constant 0 : index
    %c0_27 = arith.constant 0 : index
    %c0_28 = arith.constant 0 : index
    %55 = vector.load %arg1[%c0_26, %c0_27, %c0_28] : memref<3x256x128xf32, #tpu.memory_space<vmem>>, vector<1x256x128xf32>
    %56 = vector.shape_cast %55 : vector<1x256x128xf32> to vector<256x128xf32>
    %c2_29 = arith.constant 2 : index
    %57 = memref.load %arg3[%c2_29] : memref<15xf32, #tpu.memory_space<smem>>
    %58 = vector.broadcast %57 : f32 to vector<256x128xf32>
    %59 = arith.mulf %56, %58 : vector<256x128xf32>
    %c1_30 = arith.constant 1 : index
    %c0_31 = arith.constant 0 : index
    %c0_32 = arith.constant 0 : index
    %60 = vector.load %arg1[%c1_30, %c0_31, %c0_32] : memref<3x256x128xf32, #tpu.memory_space<vmem>>, vector<1x256x128xf32>
    %61 = vector.shape_cast %60 : vector<1x256x128xf32> to vector<256x128xf32>
    %c7 = arith.constant 7 : index
    %62 = memref.load %arg3[%c7] : memref<15xf32, #tpu.memory_space<smem>>
    %63 = vector.broadcast %62 : f32 to vector<256x128xf32>
    %64 = arith.mulf %61, %63 : vector<256x128xf32>
    %65 = arith.addf %59, %64 : vector<256x128xf32>
    %c2_33 = arith.constant 2 : index
    %c0_34 = arith.constant 0 : index
    %c0_35 = arith.constant 0 : index
    %66 = vector.load %arg1[%c2_33, %c0_34, %c0_35] : memref<3x256x128xf32, #tpu.memory_space<vmem>>, vector<1x256x128xf32>
    %67 = vector.shape_cast %66 : vector<1x256x128xf32> to vector<256x128xf32>
    %c12 = arith.constant 12 : index
    %68 = memref.load %arg3[%c12] : memref<15xf32, #tpu.memory_space<smem>>
    %69 = vector.broadcast %68 : f32 to vector<256x128xf32>
    %70 = arith.mulf %67, %69 : vector<256x128xf32>
    %71 = arith.addf %65, %70 : vector<256x128xf32>
    %c2_36 = arith.constant 2 : index
    %72 = memref.load %arg4[%c2_36] : memref<5xf32, #tpu.memory_space<smem>>
    %73 = vector.broadcast %72 : f32 to vector<256x128xf32>
    %74 = arith.addf %71, %73 : vector<256x128xf32>
    %cst_37 = arith.constant 0.000000e+00 : f32
    %75 = vector.broadcast %cst_37 : f32 to vector<256x128xf32>
    %76 = arith.maximumf %74, %75 : vector<256x128xf32>
    %c0_38 = arith.constant 0 : index
    %c2_39 = arith.constant 2 : index
    %77 = vector.load %arg2[%c0_38, %c2_39] : memref<256x5xf32, #tpu.memory_space<vmem>>, vector<256x1xf32>
    %78 = vector.broadcast %77 : vector<256x1xf32> to vector<256x128xf32>
    %79 = arith.mulf %76, %78 : vector<256x128xf32>
    %cst_40 = arith.constant dense<0.000000e+00> : vector<128xf32>
    %80 = vector.multi_reduction <add>, %79, %cst_40 [0] : vector<256x128xf32> to vector<128xf32>
    %81 = vector.shape_cast %80 : vector<128xf32> to vector<1x128xf32>
    %82 = arith.addf %54, %81 : vector<1x128xf32>
    %c0_41 = arith.constant 0 : index
    %c0_42 = arith.constant 0 : index
    %c0_43 = arith.constant 0 : index
    %83 = vector.load %arg1[%c0_41, %c0_42, %c0_43] : memref<3x256x128xf32, #tpu.memory_space<vmem>>, vector<1x256x128xf32>
    %84 = vector.shape_cast %83 : vector<1x256x128xf32> to vector<256x128xf32>
    %c3 = arith.constant 3 : index
    %85 = memref.load %arg3[%c3] : memref<15xf32, #tpu.memory_space<smem>>
    %86 = vector.broadcast %85 : f32 to vector<256x128xf32>
    %87 = arith.mulf %84, %86 : vector<256x128xf32>
    %c1_44 = arith.constant 1 : index
    %c0_45 = arith.constant 0 : index
    %c0_46 = arith.constant 0 : index
    %88 = vector.load %arg1[%c1_44, %c0_45, %c0_46] : memref<3x256x128xf32, #tpu.memory_space<vmem>>, vector<1x256x128xf32>
    %89 = vector.shape_cast %88 : vector<1x256x128xf32> to vector<256x128xf32>
    %c8 = arith.constant 8 : index
    %90 = memref.load %arg3[%c8] : memref<15xf32, #tpu.memory_space<smem>>
    %91 = vector.broadcast %90 : f32 to vector<256x128xf32>
    %92 = arith.mulf %89, %91 : vector<256x128xf32>
    %93 = arith.addf %87, %92 : vector<256x128xf32>
    %c2_47 = arith.constant 2 : index
    %c0_48 = arith.constant 0 : index
    %c0_49 = arith.constant 0 : index
    %94 = vector.load %arg1[%c2_47, %c0_48, %c0_49] : memref<3x256x128xf32, #tpu.memory_space<vmem>>, vector<1x256x128xf32>
    %95 = vector.shape_cast %94 : vector<1x256x128xf32> to vector<256x128xf32>
    %c13 = arith.constant 13 : index
    %96 = memref.load %arg3[%c13] : memref<15xf32, #tpu.memory_space<smem>>
    %97 = vector.broadcast %96 : f32 to vector<256x128xf32>
    %98 = arith.mulf %95, %97 : vector<256x128xf32>
    %99 = arith.addf %93, %98 : vector<256x128xf32>
    %c3_50 = arith.constant 3 : index
    %100 = memref.load %arg4[%c3_50] : memref<5xf32, #tpu.memory_space<smem>>
    %101 = vector.broadcast %100 : f32 to vector<256x128xf32>
    %102 = arith.addf %99, %101 : vector<256x128xf32>
    %cst_51 = arith.constant 0.000000e+00 : f32
    %103 = vector.broadcast %cst_51 : f32 to vector<256x128xf32>
    %104 = arith.maximumf %102, %103 : vector<256x128xf32>
    %c0_52 = arith.constant 0 : index
    %c3_53 = arith.constant 3 : index
    %105 = vector.load %arg2[%c0_52, %c3_53] : memref<256x5xf32, #tpu.memory_space<vmem>>, vector<256x1xf32>
    %106 = vector.broadcast %105 : vector<256x1xf32> to vector<256x128xf32>
    %107 = arith.mulf %104, %106 : vector<256x128xf32>
    %cst_54 = arith.constant dense<0.000000e+00> : vector<128xf32>
    %108 = vector.multi_reduction <add>, %107, %cst_54 [0] : vector<256x128xf32> to vector<128xf32>
    %109 = vector.shape_cast %108 : vector<128xf32> to vector<1x128xf32>
    %110 = arith.addf %82, %109 : vector<1x128xf32>
    %c0_55 = arith.constant 0 : index
    %c0_56 = arith.constant 0 : index
    %c0_57 = arith.constant 0 : index
    %111 = vector.load %arg1[%c0_55, %c0_56, %c0_57] : memref<3x256x128xf32, #tpu.memory_space<vmem>>, vector<1x256x128xf32>
    %112 = vector.shape_cast %111 : vector<1x256x128xf32> to vector<256x128xf32>
    %c4 = arith.constant 4 : index
    %113 = memref.load %arg3[%c4] : memref<15xf32, #tpu.memory_space<smem>>
    %114 = vector.broadcast %113 : f32 to vector<256x128xf32>
    %115 = arith.mulf %112, %114 : vector<256x128xf32>
    %c1_58 = arith.constant 1 : index
    %c0_59 = arith.constant 0 : index
    %c0_60 = arith.constant 0 : index
    %116 = vector.load %arg1[%c1_58, %c0_59, %c0_60] : memref<3x256x128xf32, #tpu.memory_space<vmem>>, vector<1x256x128xf32>
    %117 = vector.shape_cast %116 : vector<1x256x128xf32> to vector<256x128xf32>
    %c9 = arith.constant 9 : index
    %118 = memref.load %arg3[%c9] : memref<15xf32, #tpu.memory_space<smem>>
    %119 = vector.broadcast %118 : f32 to vector<256x128xf32>
    %120 = arith.mulf %117, %119 : vector<256x128xf32>
    %121 = arith.addf %115, %120 : vector<256x128xf32>
    %c2_61 = arith.constant 2 : index
    %c0_62 = arith.constant 0 : index
    %c0_63 = arith.constant 0 : index
    %122 = vector.load %arg1[%c2_61, %c0_62, %c0_63] : memref<3x256x128xf32, #tpu.memory_space<vmem>>, vector<1x256x128xf32>
    %123 = vector.shape_cast %122 : vector<1x256x128xf32> to vector<256x128xf32>
    %c14 = arith.constant 14 : index
    %124 = memref.load %arg3[%c14] : memref<15xf32, #tpu.memory_space<smem>>
    %125 = vector.broadcast %124 : f32 to vector<256x128xf32>
    %126 = arith.mulf %123, %125 : vector<256x128xf32>
    %127 = arith.addf %121, %126 : vector<256x128xf32>
    %c4_64 = arith.constant 4 : index
    %128 = memref.load %arg4[%c4_64] : memref<5xf32, #tpu.memory_space<smem>>
    %129 = vector.broadcast %128 : f32 to vector<256x128xf32>
    %130 = arith.addf %127, %129 : vector<256x128xf32>
    %cst_65 = arith.constant 0.000000e+00 : f32
    %131 = vector.broadcast %cst_65 : f32 to vector<256x128xf32>
    %132 = arith.maximumf %130, %131 : vector<256x128xf32>
    %c0_66 = arith.constant 0 : index
    %c4_67 = arith.constant 4 : index
    %133 = vector.load %arg2[%c0_66, %c4_67] : memref<256x5xf32, #tpu.memory_space<vmem>>, vector<256x1xf32>
    %134 = vector.broadcast %133 : vector<256x1xf32> to vector<256x128xf32>
    %135 = arith.mulf %132, %134 : vector<256x128xf32>
    %cst_68 = arith.constant dense<0.000000e+00> : vector<128xf32>
    %136 = vector.multi_reduction <add>, %135, %cst_68 [0] : vector<256x128xf32> to vector<128xf32>
    %137 = vector.shape_cast %136 : vector<128xf32> to vector<1x128xf32>
    %138 = arith.addf %110, %137 : vector<1x128xf32>
    %c0_69 = arith.constant 0 : index
    %139 = memref.load %arg5[%c0_69] : memref<1xf32, #tpu.memory_space<smem>>
    %140 = vector.broadcast %139 : f32 to vector<1x128xf32>
    %141 = arith.addf %138, %140 : vector<1x128xf32>
    %c0_70 = arith.constant 0 : index
    %c0_71 = arith.constant 0 : index
    %142 = vector.load %arg6[%c0_70, %c0_71] : memref<1x128xf32, #tpu.memory_space<vmem>>, vector<1x128xf32>
    tpu.vector_store %arg6[%c0_70, %c0_71], %141 {strides = array<i32>} : memref<1x128xf32, #tpu.memory_space<vmem>>, vector<1x128xf32>,
    return
  }
  func.func @transform_0(%arg0: i32) -> (i32, i32, i32) {
    %c0_i32 = arith.constant 0 : i32
    %c0_i32_0 = arith.constant 0 : i32
    %c0_i32_1 = arith.constant 0 : i32
    return %c0_i32, %c0_i32_0, %arg0 : i32, i32, i32
  }
  func.func @transform_1(%arg0: i32) -> (i32, i32) {
    %c0_i32 = arith.constant 0 : i32
    %c0_i32_0 = arith.constant 0 : i32
    %c0_i32_1 = arith.constant 0 : i32
    return %c0_i32, %c0_i32_0 : i32, i32
  }
  func.func @transform_2(%arg0: i32) -> i32 {
    %c0_i32 = arith.constant 0 : i32
    %c0_i32_0 = arith.constant 0 : i32
    return %c0_i32 : i32
  }
  func.func @transform_3(%arg0: i32) -> i32 {
    %c0_i32 = arith.constant 0 : i32
    %c0_i32_0 = arith.constant 0 : i32
    return %c0_i32 : i32
  }
  func.func @transform_4(%arg0: i32) -> i32 {
    %c0_i32 = arith.constant 0 : i32
    %c0_i32_0 = arith.constant 0 : i32
    return %c0_i32 : i32
  }
  func.func @transform_5(%arg0: i32) -> (i32, i32) {
    %c0_i32 = arith.constant 0 : i32
    %c0_i32_0 = arith.constant 0 : i32
    return %arg0, %c0_i32 : i32, i32
  }
}

</mosaic_0001>

<llo_original>
// kernel: tpu_custom_call.1
$region0: #{tpu_custom_call.1}
  #allocation0 [shape = 'u32[]', space=smem, size = 0x4, offset = 0x4, fixed_abs, tag = 'smem constant byte address 0x4 - core index']
  #allocation1 [shape = 'u32[144,128]{1,0:T(1,128)}', space=vmem, size = 0x12000, scoped, tag = 'internal scratch']
  #allocation2 [shape = 'f32[1]{0:T(128)S(6)}', space=smem, size = 0x200, scoped, tag = 'scoped memory for tpu_custom_call.1']
  %s0 = inlined_call_operand.hbm [shape: f32[3,256,128], index: 0, kind: input, shape index: {}]
  %s1 = inlined_call_operand.vmem [shape: f32[256,5], index: 1, kind: input, shape index: {}]
  %s2 = inlined_call_operand.vmem [shape: f32[15], index: 2, kind: input, shape index: {}]
  %s3 = inlined_call_operand.vmem [shape: f32[5], index: 3, kind: input, shape index: {}]
  %s4 = inlined_call_operand.<no memory space> [shape: f32[1], index: 4, kind: input, shape index: {}]
  %s5 = inlined_call_operand.hbm [shape: f32[1,128], index: 5, kind: output, shape index: {}]
  %s6 = sld [smem:[#allocation0]]
  $region42: #{tpu_custom_call.1} parent=0
    _
  %s8 = ssub.s32 1, %s6
  %s9 = scalar_select 0, %s8, %s6
  %10 = sst [smem:[#allocation2]] %s4
  $region1: #{tpu_custom_call.1} parent=0
    #allocation3 [shape = 'u8[393216]{0}', space=vmem, size = 0x60000, scoped, tag = 'input window, operand 0, single buffered']
    #allocation4 [shape = 's32[1]{0}', space=sflag, size = 0x4, scoped, tag = 'scoped memory for tpu_custom_call.1']
    #allocation5 [shape = 's32[1]{0}', space=sflag, size = 0x4, scoped, tag = 'scoped memory for tpu_custom_call.1']
    #allocation6 [shape = 's32[1]{0}', space=sflag, size = 0x4, scoped, tag = 'scoped memory for tpu_custom_call.1']
    #allocation7 [shape = 'u8[512]{0}', space=smem, size = 0x200, scoped, tag = 'input window, operand 2, single buffered']
    #allocation8 [shape = 'u8[512]{0}', space=smem, size = 0x200, scoped, tag = 'input window, operand 3, single buffered']
    #allocation9 [shape = 's32[1]{0}', space=sflag, size = 0x4, scoped, tag = 'scoped memory for tpu_custom_call.1']
    #allocation10 [shape = 'u8[512]{0}', space=vmem, size = 0x400, scoped, tag = 'output window, operand 0, single buffered']
    %11 = vsyncpa [#allocation4], 0
    %12 = vsyncpa [#allocation6], 0
    %13 = vsyncpa [#allocation9], 0
    %14 = vsyncpa [#allocation5], 0
    // Predicated region
    $region2: #{tpu_custom_call.1} parent=1 // pred_check
      _
    $region3: #{tpu_custom_call.1} parent=1 // pred_check_branch
      %16 = sbr.rel (0) target = $region5
    $region4: #{tpu_custom_call.1} parent=1 // pred_region
      %s18 = ssub.s32 12288, 12288
      %19 = vsyncadd [#allocation4], %s18
      %s20 = sshll.u32 [#allocation3], 4
      %s21 = int_to_ptr.vmem [resolvable:$true] %s20
      %26 = dma.hbm_to_vmem [thread:$0]  %s0, 12288, %s21, [#allocation4], 128, 128, 8
    $region5: #{tpu_custom_call.1} parent=1 // pred_fallthru
      _
    // Predicated region
    $region6: #{tpu_custom_call.1} parent=1 // pred_check
      _
    $region7: #{tpu_custom_call.1} parent=1 // pred_check_branch
      %28 = sbr.rel (0) target = $region9
    $region8: #{tpu_custom_call.1} parent=1 // pred_region
      _
    $region9: #{tpu_custom_call.1} parent=1 // pred_fallthru
      _
    // Predicated region
    $region10: #{tpu_custom_call.1} parent=1 // pred_check
      _
    $region11: #{tpu_custom_call.1} parent=1 // pred_check_branch
      %30 = sbr.rel (0) target = $region13
    $region12: #{tpu_custom_call.1} parent=1 // pred_region
      %s32 = ssub.s32 16, 16
      %33 = vsyncadd [#allocation6], %s32
      %s35 = sshll.u32 %s2, 4
      %s36 = int_to_ptr.vmem [resolvable:$true] %s35
      %38 = dma.vmem_to_smem %s36, 16, [#allocation7], [#allocation6]
    $region13: #{tpu_custom_call.1} parent=1 // pred_fallthru
      _
    // Predicated region
    $region14: #{tpu_custom_call.1} parent=1 // pred_check
      _
    $region15: #{tpu_custom_call.1} parent=1 // pred_check_branch
      %40 = sbr.rel (0) target = $region17
    $region16: #{tpu_custom_call.1} parent=1 // pred_region
      %s42 = ssub.s32 16, 16
      %43 = vsyncadd [#allocation9], %s42
      %s45 = sshll.u32 %s3, 4
      %s46 = int_to_ptr.vmem [resolvable:$true] %s45
      %48 = dma.vmem_to_smem %s46, 16, [#allocation8], [#allocation9]
    $region17: #{tpu_custom_call.1} parent=1 // pred_fallthru
      _
    // Predicated region
    $region18: #{tpu_custom_call.1} parent=1 // pred_check
      _
    $region19: #{tpu_custom_call.1} parent=1 // pred_check_branch
      %50 = sbr.rel (0) target = $region21
    $region20: #{tpu_custom_call.1} parent=1 // pred_region
      _
    $region21: #{tpu_custom_call.1} parent=1 // pred_fallthru
      _
    // Predicated region
    $region22: #{tpu_custom_call.1} parent=1 // pred_check
      _
    $region23: #{tpu_custom_call.1} parent=1 // pred_check_branch
      %52 = sbr.rel (0) target = $region25
    $region24: #{tpu_custom_call.1} parent=1 // pred_region
      %53 = dma.done [#allocation4], 12288
    $region25: #{tpu_custom_call.1} parent=1 // pred_fallthru
      _
    // Predicated region
    $region26: #{tpu_custom_call.1} parent=1 // pred_check
      _
    $region27: #{tpu_custom_call.1} parent=1 // pred_check_branch
      %55 = sbr.rel (0) target = $region29
    $region28: #{tpu_custom_call.1} parent=1 // pred_region
      %56 = dma.done [#allocation6], 16
    $region29: #{tpu_custom_call.1} parent=1 // pred_fallthru
      _
    // Predicated region
    $region30: #{tpu_custom_call.1} parent=1 // pred_check
      _
    $region31: #{tpu_custom_call.1} parent=1 // pred_check_branch
      %58 = sbr.rel (0) target = $region33
    $region32: #{tpu_custom_call.1} parent=1 // pred_region
      %59 = dma.done [#allocation9], 16
    $region33: #{tpu_custom_call.1} parent=1 // pred_fallthru
      _
    %60 = sfence
    %v61 = vld [vmem:[#allocation3] sm:$0xff]
    %v62 = vld [vmem:[#allocation3 + $0x8] sm:$0xff]
    %v63 = vld [vmem:[#allocation3 + $0x10] sm:$0xff]
    %v64 = vld [vmem:[#allocation3 + $0x18] sm:$0xff]
    %v65 = vld [vmem:[#allocation3 + $0x20] sm:$0xff]
    %v66 = vld [vmem:[#allocation3 + $0x28] sm:$0xff]
    %v67 = vld [vmem:[#allocation3 + $0x30] sm:$0xff]
    %v68 = vld [vmem:[#allocation3 + $0x38] sm:$0xff]
    %v69 = vld [vmem:[#allocation3 + $0x40] sm:$0xff]
    %v70 = vld [vmem:[#allocation3 + $0x48] sm:$0xff]
    %v71 = vld [vmem:[#allocation3 + $0x50] sm:$0xff]
    %v72 = vld [vmem:[#allocation3 + $0x58] sm:$0xff]
    %v73 = vld [vmem:[#allocation3 + $0x60] sm:$0xff]
    %v74 = vld [vmem:[#allocation3 + $0x68] sm:$0xff]
    %v75 = vld [vmem:[#allocation3 + $0x70] sm:$0xff]
    %v76 = vld [vmem:[#allocation3 + $0x78] sm:$0xff]
    %v77 = vld [vmem:[#allocation3 + $0x80] sm:$0xff]
    %v78 = vld [vmem:[#allocation3 + $0x88] sm:$0xff]
    %v79 = vld [vmem:[#allocation3 + $0x90] sm:$0xff]
    %v80 = vld [vmem:[#allocation3 + $0x98] sm:$0xff]
    %v81 = vld [vmem:[#allocation3 + $0xa0] sm:$0xff]
    %v82 = vld [vmem:[#allocation3 + $0xa8] sm:$0xff]
    %v83 = vld [vmem:[#allocation3 + $0xb0] sm:$0xff]
    %v84 = vld [vmem:[#allocation3 + $0xb8] sm:$0xff]
    %v85 = vld [vmem:[#allocation3 + $0xc0] sm:$0xff]
    %v86 = vld [vmem:[#allocation3 + $0xc8] sm:$0xff]
    %v87 = vld [vmem:[#allocation3 + $0xd0] sm:$0xff]
    %v88 = vld [vmem:[#allocation3 + $0xd8] sm:$0xff]
    %v89 = vld [vmem:[#allocation3 + $0xe0] sm:$0xff]
    %v90 = vld [vmem:[#allocation3 + $0xe8] sm:$0xff]
    %v91 = vld [vmem:[#allocation3 + $0xf0] sm:$0xff]
    %v92 = vld [vmem:[#allocation3 + $0xf8] sm:$0xff]
    %s93 = sld [smem:[#allocation7]]
    %v94 = vstv %s93
    %v95 = vmul.f32 %v61, %v94
    %v96 = vmul.f32 %v62, %v94
    %v97 = vmul.f32 %v63, %v94
    %v98 = vmul.f32 %v64, %v94
    %v99 = vmul.f32 %v65, %v94
    %v100 = vmul.f32 %v66, %v94
    %v101 = vmul.f32 %v67, %v94
    %v102 = vmul.f32 %v68, %v94
    %v103 = vmul.f32 %v69, %v94
    %v104 = vmul.f32 %v70, %v94
    %v105 = vmul.f32 %v71, %v94
    %v106 = vmul.f32 %v72, %v94
    %v107 = vmul.f32 %v73, %v94
    %v108 = vmul.f32 %v74, %v94
    %v109 = vmul.f32 %v75, %v94
    %v110 = vmul.f32 %v76, %v94
    %v111 = vmul.f32 %v77, %v94
    %v112 = vmul.f32 %v78, %v94
    %v113 = vmul.f32 %v79, %v94
    %v114 = vmul.f32 %v80, %v94
    %v115 = vmul.f32 %v81, %v94
    %v116 = vmul.f32 %v82, %v94
    %v117 = vmul.f32 %v83, %v94
    %v118 = vmul.f32 %v84, %v94
    %v119 = vmul.f32 %v85, %v94
    %v120 = vmul.f32 %v86, %v94
    %v121 = vmul.f32 %v87, %v94
    %v122 = vmul.f32 %v88, %v94
    %v123 = vmul.f32 %v89, %v94
    %v124 = vmul.f32 %v90, %v94
    %v125 = vmul.f32 %v91, %v94
    %v126 = vmul.f32 %v92, %v94
    %s127 = scalar_lea.vmem [#allocation3], 256
    %v128 = vld [vmem:[%s127] sm:$0xff]
    %v129 = vld [vmem:[%s127 + $0x8] sm:$0xff]
    %v130 = vld [vmem:[%s127 + $0x10] sm:$0xff]
    %v131 = vld [vmem:[%s127 + $0x18] sm:$0xff]
    %v132 = vld [vmem:[%s127 + $0x20] sm:$0xff]
    %v133 = vld [vmem:[%s127 + $0x28] sm:$0xff]
    %v134 = vld [vmem:[%s127 + $0x30] sm:$0xff]
    %v135 = vld [vmem:[%s127 + $0x38] sm:$0xff]
    %v136 = vld [vmem:[%s127 + $0x40] sm:$0xff]
    %v137 = vld [vmem:[%s127 + $0x48] sm:$0xff]
    %v138 = vld [vmem:[%s127 + $0x50] sm:$0xff]
    %v139 = vld [vmem:[%s127 + $0x58] sm:$0xff]
    %v140 = vld [vmem:[%s127 + $0x60] sm:$0xff]
    %v141 = vld [vmem:[%s127 + $0x68] sm:$0xff]
    %v142 = vld [vmem:[%s127 + $0x70] sm:$0xff]
    %v143 = vld [vmem:[%s127 + $0x78] sm:$0xff]
    %v144 = vld [vmem:[%s127 + $0x80] sm:$0xff]
    %v145 = vld [vmem:[%s127 + $0x88] sm:$0xff]
    %v146 = vld [vmem:[%s127 + $0x90] sm:$0xff]
    %v147 = vld [vmem:[%s127 + $0x98] sm:$0xff]
    %v148 = vld [vmem:[%s127 + $0xa0] sm:$0xff]
    %v149 = vld [vmem:[%s127 + $0xa8] sm:$0xff]
    %v150 = vld [vmem:[%s127 + $0xb0] sm:$0xff]
    %v151 = vld [vmem:[%s127 + $0xb8] sm:$0xff]
    %v152 = vld [vmem:[%s127 + $0xc0] sm:$0xff]
    %v153 = vld [vmem:[%s127 + $0xc8] sm:$0xff]
    %v154 = vld [vmem:[%s127 + $0xd0] sm:$0xff]
    %v155 = vld [vmem:[%s127 + $0xd8] sm:$0xff]
    %v156 = vld [vmem:[%s127 + $0xe0] sm:$0xff]
    %v157 = vld [vmem:[%s127 + $0xe8] sm:$0xff]
    %v158 = vld [vmem:[%s127 + $0xf0] sm:$0xff]
    %v159 = vld [vmem:[%s127 + $0xf8] sm:$0xff]
    %s160 = sld [smem:[#allocation7 + $0x5]]
    %v161 = vstv %s160
    %v162 = vmul.f32 %v128, %v161
    %v163 = vmul.f32 %v129, %v161
    %v164 = vmul.f32 %v130, %v161
    %v165 = vmul.f32 %v131, %v161
    %v166 = vmul.f32 %v132, %v161
    %v167 = vmul.f32 %v133, %v161
    %v168 = vmul.f32 %v134, %v161
    %v169 = vmul.f32 %v135, %v161
    %v170 = vmul.f32 %v136, %v161
    %v171 = vmul.f32 %v137, %v161
    %v172 = vmul.f32 %v138, %v161
    %v173 = vmul.f32 %v139, %v161
    %v174 = vmul.f32 %v140, %v161
    %v175 = vmul.f32 %v141, %v161
    %v176 = vmul.f32 %v142, %v161
    %v177 = vmul.f32 %v143, %v161
    %v178 = vmul.f32 %v144, %v161
    %v179 = vmul.f32 %v145, %v161
    %v180 = vmul.f32 %v146, %v161
    %v181 = vmul.f32 %v147, %v161
    %v182 = vmul.f32 %v148, %v161
    %v183 = vmul.f32 %v149, %v161
    %v184 = vmul.f32 %v150, %v161
    %v185 = vmul.f32 %v151, %v161
    %v186 = vmul.f32 %v152, %v161
    %v187 = vmul.f32 %v153, %v161
    %v188 = vmul.f32 %v154, %v161
    %v189 = vmul.f32 %v155, %v161
    %v190 = vmul.f32 %v156, %v161
    %v191 = vmul.f32 %v157, %v161
    %v192 = vmul.f32 %v158, %v161
    %v193 = vmul.f32 %v159, %v161
    %v194 = vadd.f32 %v95, %v162
    %v195 = vadd.f32 %v96, %v163
    %v196 = vadd.f32 %v97, %v164
    %v197 = vadd.f32 %v98, %v165
    %v198 = vadd.f32 %v99, %v166
    %v199 = vadd.f32 %v100, %v167
    %v200 = vadd.f32 %v101, %v168
    %v201 = vadd.f32 %v102, %v169
    %v202 = vadd.f32 %v103, %v170
    %v203 = vadd.f32 %v104, %v171
    %v204 = vadd.f32 %v105, %v172
    %v205 = vadd.f32 %v106, %v173
    %v206 = vadd.f32 %v107, %v174
    %v207 = vadd.f32 %v108, %v175
    %v208 = vadd.f32 %v109, %v176
    %v209 = vadd.f32 %v110, %v177
    %v210 = vadd.f32 %v111, %v178
    %v211 = vadd.f32 %v112, %v179
    %v212 = vadd.f32 %v113, %v180
    %v213 = vadd.f32 %v114, %v181
    %v214 = vadd.f32 %v115, %v182
    %v215 = vadd.f32 %v116, %v183
    %v216 = vadd.f32 %v117, %v184
    %v217 = vadd.f32 %v118, %v185
    %v218 = vadd.f32 %v119, %v186
    %v219 = vadd.f32 %v120, %v187
    %v220 = vadd.f32 %v121, %v188
    %v221 = vadd.f32 %v122, %v189
    %v222 = vadd.f32 %v123, %v190
    %v223 = vadd.f32 %v124, %v191
    %v224 = vadd.f32 %v125, %v192
    %v225 = vadd.f32 %v126, %v193
    %s226 = scalar_lea.vmem [#allocation3], 512
    %v227 = vld [vmem:[%s226] sm:$0xff]
    %v228 = vld [vmem:[%s226 + $0x8] sm:$0xff]
    %v229 = vld [vmem:[%s226 + $0x10] sm:$0xff]
    %v230 = vld [vmem:[%s226 + $0x18] sm:$0xff]
    %v231 = vld [vmem:[%s226 + $0x20] sm:$0xff]
    %v232 = vld [vmem:[%s226 + $0x28] sm:$0xff]
    %v233 = vld [vmem:[%s226 + $0x30] sm:$0xff]
    %v234 = vld [vmem:[%s226 + $0x38] sm:$0xff]
    %v235 = vld [vmem:[%s226 + $0x40] sm:$0xff]
    %v236 = vld [vmem:[%s226 + $0x48] sm:$0xff]
    %v237 = vld [vmem:[%s226 + $0x50] sm:$0xff]
    %v238 = vld [vmem:[%s226 + $0x58] sm:$0xff]
    %v239 = vld [vmem:[%s226 + $0x60] sm:$0xff]
    %v240 = vld [vmem:[%s226 + $0x68] sm:$0xff]
    %v241 = vld [vmem:[%s226 + $0x70] sm:$0xff]
    %v242 = vld [vmem:[%s226 + $0x78] sm:$0xff]
    %v243 = vld [vmem:[%s226 + $0x80] sm:$0xff]
    %v244 = vld [vmem:[%s226 + $0x88] sm:$0xff]
    %v245 = vld [vmem:[%s226 + $0x90] sm:$0xff]
    %v246 = vld [vmem:[%s226 + $0x98] sm:$0xff]
    %v247 = vld [vmem:[%s226 + $0xa0] sm:$0xff]
    %v248 = vld [vmem:[%s226 + $0xa8] sm:$0xff]
    %v249 = vld [vmem:[%s226 + $0xb0] sm:$0xff]
    %v250 = vld [vmem:[%s226 + $0xb8] sm:$0xff]
    %v251 = vld [vmem:[%s226 + $0xc0] sm:$0xff]
    %v252 = vld [vmem:[%s226 + $0xc8] sm:$0xff]
    %v253 = vld [vmem:[%s226 + $0xd0] sm:$0xff]
    %v254 = vld [vmem:[%s226 + $0xd8] sm:$0xff]
    %v255 = vld [vmem:[%s226 + $0xe0] sm:$0xff]
    %v256 = vld [vmem:[%s226 + $0xe8] sm:$0xff]
    %v257 = vld [vmem:[%s226 + $0xf0] sm:$0xff]
    %v258 = vld [vmem:[%s226 + $0xf8] sm:$0xff]
    %s259 = sld [smem:[#allocation7 + $0xa]]
    %v260 = vstv %s259
    %v261 = vmul.f32 %v227, %v260
    %v262 = vmul.f32 %v228, %v260
    %v263 = vmul.f32 %v229, %v260
    %v264 = vmul.f32 %v230, %v260
    %v265 = vmul.f32 %v231, %v260
    %v266 = vmul.f32 %v232, %v260
    %v267 = vmul.f32 %v233, %v260
    %v268 = vmul.f32 %v234, %v260
    %v269 = vmul.f32 %v235, %v260
    %v270 = vmul.f32 %v236, %v260
    %v271 = vmul.f32 %v237, %v260
    %v272 = vmul.f32 %v238, %v260
    %v273 = vmul.f32 %v239, %v260
    %v274 = vmul.f32 %v240, %v260
    %v275 = vmul.f32 %v241, %v260
    %v276 = vmul.f32 %v242, %v260
    %v277 = vmul.f32 %v243, %v260
    %v278 = vmul.f32 %v244, %v260
    %v279 = vmul.f32 %v245, %v260
    %v280 = vmul.f32 %v246, %v260
    %v281 = vmul.f32 %v247, %v260
    %v282 = vmul.f32 %v248, %v260
    %v283 = vmul.f32 %v249, %v260
    %v284 = vmul.f32 %v250, %v260
    %v285 = vmul.f32 %v251, %v260
    %v286 = vmul.f32 %v252, %v260
    %v287 = vmul.f32 %v253, %v260
    %v288 = vmul.f32 %v254, %v260
    %v289 = vmul.f32 %v255, %v260
    %v290 = vmul.f32 %v256, %v260
    %v291 = vmul.f32 %v257, %v260
    %v292 = vmul.f32 %v258, %v260
    %v293 = vadd.f32 %v194, %v261
    %v294 = vadd.f32 %v195, %v262
    %v295 = vadd.f32 %v196, %v263
    %v296 = vadd.f32 %v197, %v264
    %v297 = vadd.f32 %v198, %v265
    %v298 = vadd.f32 %v199, %v266
    %v299 = vadd.f32 %v200, %v267
    %v300 = vadd.f32 %v201, %v268
    %v301 = vadd.f32 %v202, %v269
    %v302 = vadd.f32 %v203, %v270
    %v303 = vadd.f32 %v204, %v271
    %v304 = vadd.f32 %v205, %v272
    %v305 = vadd.f32 %v206, %v273
    %v306 = vadd.f32 %v207, %v274
    %v307 = vadd.f32 %v208, %v275
    %v308 = vadd.f32 %v209, %v276
    %v309 = vadd.f32 %v210, %v277
    %v310 = vadd.f32 %v211, %v278
    %v311 = vadd.f32 %v212, %v279
    %v312 = vadd.f32 %v213, %v280
    %v313 = vadd.f32 %v214, %v281
    %v314 = vadd.f32 %v215, %v282
    %v315 = vadd.f32 %v216, %v283
    %v316 = vadd.f32 %v217, %v284
    %v317 = vadd.f32 %v218, %v285
    %v318 = vadd.f32 %v219, %v286
    %v319 = vadd.f32 %v220, %v287
    %v320 = vadd.f32 %v221, %v288
    %v321 = vadd.f32 %v222, %v289
    %v322 = vadd.f32 %v223, %v290
    %v323 = vadd.f32 %v224, %v291
    %v324 = vadd.f32 %v225, %v292
    %s325 = sld [smem:[#allocation8]]
    %v326 = vstv %s325
    %v327 = vadd.f32 %v293, %v326
    %v328 = vadd.f32 %v294, %v326
    %v329 = vadd.f32 %v295, %v326
    %v330 = vadd.f32 %v296, %v326
    %v331 = vadd.f32 %v297, %v326
    %v332 = vadd.f32 %v298, %v326
    %v333 = vadd.f32 %v299, %v326
    %v334 = vadd.f32 %v300, %v326
    %v335 = vadd.f32 %v301, %v326
    %v336 = vadd.f32 %v302, %v326
    %v337 = vadd.f32 %v303, %v326
    %v338 = vadd.f32 %v304, %v326
    %v339 = vadd.f32 %v305, %v326
    %v340 = vadd.f32 %v306, %v326
    %v341 = vadd.f32 %v307, %v326
    %v342 = vadd.f32 %v308, %v326
    %v343 = vadd.f32 %v309, %v326
    %v344 = vadd.f32 %v310, %v326
    %v345 = vadd.f32 %v311, %v326
    %v346 = vadd.f32 %v312, %v326
    %v347 = vadd.f32 %v313, %v326
    %v348 = vadd.f32 %v314, %v326
    %v349 = vadd.f32 %v315, %v326
    %v350 = vadd.f32 %v316, %v326
    %v351 = vadd.f32 %v317, %v326
    %v352 = vadd.f32 %v318, %v326
    %v353 = vadd.f32 %v319, %v326
    %v354 = vadd.f32 %v320, %v326
    %v355 = vadd.f32 %v321, %v326
    %v356 = vadd.f32 %v322, %v326
    %v357 = vadd.f32 %v323, %v326
    %v358 = vadd.f32 %v324, %v326
    %v359 = vmax.f32 %v327, 0.0
    %v360 = vmax.f32 %v328, 0.0
    %v361 = vmax.f32 %v329, 0.0
    %v362 = vmax.f32 %v330, 0.0
    %v363 = vmax.f32 %v331, 0.0
    %v364 = vmax.f32 %v332, 0.0
    %v365 = vmax.f32 %v333, 0.0
    %v366 = vmax.f32 %v334, 0.0
    %v367 = vmax.f32 %v335, 0.0
    %v368 = vmax.f32 %v336, 0.0
    %v369 = vmax.f32 %v337, 0.0
    %v370 = vmax.f32 %v338, 0.0
    %v371 = vmax.f32 %v339, 0.0
    %v372 = vmax.f32 %v340, 0.0
    %v373 = vmax.f32 %v341, 0.0
    %v374 = vmax.f32 %v342, 0.0
    %v375 = vmax.f32 %v343, 0.0
    %v376 = vmax.f32 %v344, 0.0
    %v377 = vmax.f32 %v345, 0.0
    %v378 = vmax.f32 %v346, 0.0
    %v379 = vmax.f32 %v347, 0.0
    %v380 = vmax.f32 %v348, 0.0
    %v381 = vmax.f32 %v349, 0.0
    %v382 = vmax.f32 %v350, 0.0
    %v383 = vmax.f32 %v351, 0.0
    %v384 = vmax.f32 %v352, 0.0
    %v385 = vmax.f32 %v353, 0.0
    %v386 = vmax.f32 %v354, 0.0
    %v387 = vmax.f32 %v355, 0.0
    %v388 = vmax.f32 %v356, 0.0
    %v389 = vmax.f32 %v357, 0.0
    %v390 = vmax.f32 %v358, 0.0
    %v391 = vld [vmem:[%s1] sm:$0xff]
    %v392 = vld [vmem:[%s1 + $0x8] sm:$0xff]
    %v393 = vld [vmem:[%s1 + $0x10] sm:$0xff]
    %v394 = vld [vmem:[%s1 + $0x18] sm:$0xff]
    %v395 = vld [vmem:[%s1 + $0x20] sm:$0xff]
    %v396 = vld [vmem:[%s1 + $0x28] sm:$0xff]
    %v397 = vld [vmem:[%s1 + $0x30] sm:$0xff]
    %v398 = vld [vmem:[%s1 + $0x38] sm:$0xff]
    %v399 = vld [vmem:[%s1 + $0x40] sm:$0xff]
    %v400 = vld [vmem:[%s1 + $0x48] sm:$0xff]
    %v401 = vld [vmem:[%s1 + $0x50] sm:$0xff]
    %v402 = vld [vmem:[%s1 + $0x58] sm:$0xff]
    %v403 = vld [vmem:[%s1 + $0x60] sm:$0xff]
    %v404 = vld [vmem:[%s1 + $0x68] sm:$0xff]
    %v405 = vld [vmem:[%s1 + $0x70] sm:$0xff]
    %v406 = vld [vmem:[%s1 + $0x78] sm:$0xff]
    %v407 = vld [vmem:[%s1 + $0x80] sm:$0xff]
    %v408 = vld [vmem:[%s1 + $0x88] sm:$0xff]
    %v409 = vld [vmem:[%s1 + $0x90] sm:$0xff]
    %v410 = vld [vmem:[%s1 + $0x98] sm:$0xff]
    %v411 = vld [vmem:[%s1 + $0xa0] sm:$0xff]
    %v412 = vld [vmem:[%s1 + $0xa8] sm:$0xff]
    %v413 = vld [vmem:[%s1 + $0xb0] sm:$0xff]
    %v414 = vld [vmem:[%s1 + $0xb8] sm:$0xff]
    %v415 = vld [vmem:[%s1 + $0xc0] sm:$0xff]
    %v416 = vld [vmem:[%s1 + $0xc8] sm:$0xff]
    %v417 = vld [vmem:[%s1 + $0xd0] sm:$0xff]
    %v418 = vld [vmem:[%s1 + $0xd8] sm:$0xff]
    %v419 = vld [vmem:[%s1 + $0xe0] sm:$0xff]
    %v420 = vld [vmem:[%s1 + $0xe8] sm:$0xff]
    %v421 = vld [vmem:[%s1 + $0xf0] sm:$0xff]
    %v422 = vld [vmem:[%s1 + $0xf8] sm:$0xff]
    %424 = vset.pattern.permute.xlu0 0
    %425 = vperm.xlu0 %424, %v391
    %v426 = vpop.permute.xlu0 %425
    %429 = vset.pattern.permute.xlu0 0
    %430 = vperm.xlu0 %429, %v392
    %v431 = vpop.permute.xlu0 %430
    %434 = vset.pattern.permute.xlu0 0
    %435 = vperm.xlu0 %434, %v393
    %v436 = vpop.permute.xlu0 %435
    %439 = vset.pattern.permute.xlu0 0
    %440 = vperm.xlu0 %439, %v394
    %v441 = vpop.permute.xlu0 %440
    %444 = vset.pattern.permute.xlu0 0
    %445 = vperm.xlu0 %444, %v395
    %v446 = vpop.permute.xlu0 %445
    %449 = vset.pattern.permute.xlu0 0
    %450 = vperm.xlu0 %449, %v396
    %v451 = vpop.permute.xlu0 %450
    %454 = vset.pattern.permute.xlu0 0
    %455 = vperm.xlu0 %454, %v397
    %v456 = vpop.permute.xlu0 %455
    %459 = vset.pattern.permute.xlu0 0
    %460 = vperm.xlu0 %459, %v398
    %v461 = vpop.permute.xlu0 %460
    %464 = vset.pattern.permute.xlu0 0
    %465 = vperm.xlu0 %464, %v399
    %v466 = vpop.permute.xlu0 %465
    %469 = vset.pattern.permute.xlu0 0
    %470 = vperm.xlu0 %469, %v400
    %v471 = vpop.permute.xlu0 %470
    %474 = vset.pattern.permute.xlu0 0
    %475 = vperm.xlu0 %474, %v401
    %v476 = vpop.permute.xlu0 %475
    %479 = vset.pattern.permute.xlu0 0
    %480 = vperm.xlu0 %479, %v402
    %v481 = vpop.permute.xlu0 %480
    %484 = vset.pattern.permute.xlu0 0
    %485 = vperm.xlu0 %484, %v403
    %v486 = vpop.permute.xlu0 %485
    %489 = vset.pattern.permute.xlu0 0
    %490 = vperm.xlu0 %489, %v404
    %v491 = vpop.permute.xlu0 %490
    %494 = vset.pattern.permute.xlu0 0
    %495 = vperm.xlu0 %494, %v405
    %v496 = vpop.permute.xlu0 %495
    %499 = vset.pattern.permute.xlu0 0
    %500 = vperm.xlu0 %499, %v406
    %v501 = vpop.permute.xlu0 %500
    %504 = vset.pattern.permute.xlu0 0
    %505 = vperm.xlu0 %504, %v407
    %v506 = vpop.permute.xlu0 %505
    %509 = vset.pattern.permute.xlu0 0
    %510 = vperm.xlu0 %509, %v408
    %v511 = vpop.permute.xlu0 %510
    %514 = vset.pattern.permute.xlu0 0
    %515 = vperm.xlu0 %514, %v409
    %v516 = vpop.permute.xlu0 %515
    %519 = vset.pattern.permute.xlu0 0
    %520 = vperm.xlu0 %519, %v410
    %v521 = vpop.permute.xlu0 %520
    %524 = vset.pattern.permute.xlu0 0
    %525 = vperm.xlu0 %524, %v411
    %v526 = vpop.permute.xlu0 %525
    %529 = vset.pattern.permute.xlu0 0
    %530 = vperm.xlu0 %529, %v412
    %v531 = vpop.permute.xlu0 %530
    %534 = vset.pattern.permute.xlu0 0
    %535 = vperm.xlu0 %534, %v413
    %v536 = vpop.permute.xlu0 %535
    %539 = vset.pattern.permute.xlu0 0
    %540 = vperm.xlu0 %539, %v414
    %v541 = vpop.permute.xlu0 %540
    %544 = vset.pattern.permute.xlu0 0
    %545 = vperm.xlu0 %544, %v415
    %v546 = vpop.permute.xlu0 %545
    %549 = vset.pattern.permute.xlu0 0
    %550 = vperm.xlu0 %549, %v416
    %v551 = vpop.permute.xlu0 %550
    %554 = vset.pattern.permute.xlu0 0
    %555 = vperm.xlu0 %554, %v417
    %v556 = vpop.permute.xlu0 %555
    %559 = vset.pattern.permute.xlu0 0
    %560 = vperm.xlu0 %559, %v418
    %v561 = vpop.permute.xlu0 %560
    %564 = vset.pattern.permute.xlu0 0
    %565 = vperm.xlu0 %564, %v419
    %v566 = vpop.permute.xlu0 %565
    %569 = vset.pattern.permute.xlu0 0
    %570 = vperm.xlu0 %569, %v420
    %v571 = vpop.permute.xlu0 %570
    %574 = vset.pattern.permute.xlu0 0
    %575 = vperm.xlu0 %574, %v421
    %v576 = vpop.permute.xlu0 %575
    %579 = vset.pattern.permute.xlu0 0
    %580 = vperm.xlu0 %579, %v422
    %v581 = vpop.permute.xlu0 %580
    %v583 = vmul.f32 %v359, %v426
    %v584 = vmul.f32 %v360, %v431
    %v585 = vmul.f32 %v361, %v436
    %v586 = vmul.f32 %v362, %v441
    %v587 = vmul.f32 %v363, %v446
    %v588 = vmul.f32 %v364, %v451
    %v589 = vmul.f32 %v365, %v456
    %v590 = vmul.f32 %v366, %v461
    %v591 = vmul.f32 %v367, %v466
    %v592 = vmul.f32 %v368, %v471
    %v593 = vmul.f32 %v369, %v476
    %v594 = vmul.f32 %v370, %v481
    %v595 = vmul.f32 %v371, %v486
    %v596 = vmul.f32 %v372, %v491
    %v597 = vmul.f32 %v373, %v496
    %v598 = vmul.f32 %v374, %v501
    %v599 = vmul.f32 %v375, %v506
    %v600 = vmul.f32 %v376, %v511
    %v601 = vmul.f32 %v377, %v516
    %v602 = vmul.f32 %v378, %v521
    %v603 = vmul.f32 %v379, %v526
    %v604 = vmul.f32 %v380, %v531
    %v605 = vmul.f32 %v381, %v536
    %v606 = vmul.f32 %v382, %v541
    %v607 = vmul.f32 %v383, %v546
    %v608 = vmul.f32 %v384, %v551
    %v609 = vmul.f32 %v385, %v556
    %v610 = vmul.f32 %v386, %v561
    %v611 = vmul.f32 %v387, %v566
    %v612 = vmul.f32 %v388, %v571
    %v613 = vmul.f32 %v389, %v576
    %v614 = vmul.f32 %v390, %v581
    %v615 = vadd.f32 %v583, %v584
    %v616 = vadd.f32 %v615, %v585
    %v617 = vadd.f32 %v616, %v586
    %v618 = vadd.f32 %v617, %v587
    %v619 = vadd.f32 %v618, %v588
    %v620 = vadd.f32 %v619, %v589
    %v621 = vadd.f32 %v620, %v590
    %v622 = vadd.f32 %v621, %v591
    %v623 = vadd.f32 %v622, %v592
    %v624 = vadd.f32 %v623, %v593
    %v625 = vadd.f32 %v624, %v594
    %v626 = vadd.f32 %v625, %v595
    %v627 = vadd.f32 %v626, %v596
    %v628 = vadd.f32 %v627, %v597
    %v629 = vadd.f32 %v628, %v598
    %v630 = vadd.f32 %v629, %v599
    %v631 = vadd.f32 %v630, %v600
    %v632 = vadd.f32 %v631, %v601
    %v633 = vadd.f32 %v632, %v602
    %v634 = vadd.f32 %v633, %v603
    %v635 = vadd.f32 %v634, %v604
    %v636 = vadd.f32 %v635, %v605
    %v637 = vadd.f32 %v636, %v606
    %v638 = vadd.f32 %v637, %v607
    %v639 = vadd.f32 %v638, %v608
    %v640 = vadd.f32 %v639, %v609
    %v641 = vadd.f32 %v640, %v610
    %v642 = vadd.f32 %v641, %v611
    %v643 = vadd.f32 %v642, %v612
    %v644 = vadd.f32 %v643, %v613
    %v645 = vadd.f32 %v644, %v614
    %v646 = vrot.slane %v645, 4
    %v647 = vadd.f32 %v645, %v646
    %v648 = vrot.slane %v647, 2
    %v649 = vadd.f32 %v647, %v648
    %v650 = vrot.slane %v649, 1
    %v651 = vadd.f32 %v649, %v650
    %s652 = sld [smem:[#allocation7 + $0x1]]
    %v653 = vstv %s652
    %v654 = vmul.f32 %v61, %v653
    %v655 = vmul.f32 %v62, %v653
    %v656 = vmul.f32 %v63, %v653
    %v657 = vmul.f32 %v64, %v653
    %v658 = vmul.f32 %v65, %v653
    %v659 = vmul.f32 %v66, %v653
    %v660 = vmul.f32 %v67, %v653
    %v661 = vmul.f32 %v68, %v653
    %v662 = vmul.f32 %v69, %v653
    %v663 = vmul.f32 %v70, %v653
    %v664 = vmul.f32 %v71, %v653
    %v665 = vmul.f32 %v72, %v653
    %v666 = vmul.f32 %v73, %v653
    %v667 = vmul.f32 %v74, %v653
    %v668 = vmul.f32 %v75, %v653
    %v669 = vmul.f32 %v76, %v653
    %v670 = vmul.f32 %v77, %v653
    %v671 = vmul.f32 %v78, %v653
    %v672 = vmul.f32 %v79, %v653
    %v673 = vmul.f32 %v80, %v653
    %v674 = vmul.f32 %v81, %v653
    %v675 = vmul.f32 %v82, %v653
    %v676 = vmul.f32 %v83, %v653
    %v677 = vmul.f32 %v84, %v653
    %v678 = vmul.f32 %v85, %v653
    %v679 = vmul.f32 %v86, %v653
    %v680 = vmul.f32 %v87, %v653
    %v681 = vmul.f32 %v88, %v653
    %v682 = vmul.f32 %v89, %v653
    %v683 = vmul.f32 %v90, %v653
    %v684 = vmul.f32 %v91, %v653
    %v685 = vmul.f32 %v92, %v653
    %s686 = sld [smem:[#allocation7 + $0x6]]
    %v687 = vstv %s686
    %v688 = vmul.f32 %v128, %v687
    %v689 = vmul.f32 %v129, %v687
    %v690 = vmul.f32 %v130, %v687
    %v691 = vmul.f32 %v131, %v687
    %v692 = vmul.f32 %v132, %v687
    %v693 = vmul.f32 %v133, %v687
    %v694 = vmul.f32 %v134, %v687
    %v695 = vmul.f32 %v135, %v687
    %v696 = vmul.f32 %v136, %v687
    %v697 = vmul.f32 %v137, %v687
    %v698 = vmul.f32 %v138, %v687
    %v699 = vmul.f32 %v139, %v687
    %v700 = vmul.f32 %v140, %v687
    %v701 = vmul.f32 %v141, %v687
    %v702 = vmul.f32 %v142, %v687
    %v703 = vmul.f32 %v143, %v687
    %v704 = vmul.f32 %v144, %v687
    %v705 = vmul.f32 %v145, %v687
    %v706 = vmul.f32 %v146, %v687
    %v707 = vmul.f32 %v147, %v687
    %v708 = vmul.f32 %v148, %v687
    %v709 = vmul.f32 %v149, %v687
    %v710 = vmul.f32 %v150, %v687
    %v711 = vmul.f32 %v151, %v687
    %v712 = vmul.f32 %v152, %v687
    %v713 = vmul.f32 %v153, %v687
    %v714 = vmul.f32 %v154, %v687
    %v715 = vmul.f32 %v155, %v687
    %v716 = vmul.f32 %v156, %v687
    %v717 = vmul.f32 %v157, %v687
    %v718 = vmul.f32 %v158, %v687
    %v719 = vmul.f32 %v159, %v687
    %v720 = vadd.f32 %v654, %v688
    %v721 = vadd.f32 %v655, %v689
    %v722 = vadd.f32 %v656, %v690
    %v723 = vadd.f32 %v657, %v691
    %v724 = vadd.f32 %v658, %v692
    %v725 = vadd.f32 %v659, %v693
    %v726 = vadd.f32 %v660, %v694
    %v727 = vadd.f32 %v661, %v695
    %v728 = vadd.f32 %v662, %v696
    %v729 = vadd.f32 %v663, %v697
    %v730 = vadd.f32 %v664, %v698
    %v731 = vadd.f32 %v665, %v699
    %v732 = vadd.f32 %v666, %v700
    %v733 = vadd.f32 %v667, %v701
    %v734 = vadd.f32 %v668, %v702
    %v735 = vadd.f32 %v669, %v703
    %v736 = vadd.f32 %v670, %v704
    %v737 = vadd.f32 %v671, %v705
    %v738 = vadd.f32 %v672, %v706
    %v739 = vadd.f32 %v673, %v707
    %v740 = vadd.f32 %v674, %v708
    %v741 = vadd.f32 %v675, %v709
    %v742 = vadd.f32 %v676, %v710
    %v743 = vadd.f32 %v677, %v711
    %v744 = vadd.f32 %v678, %v712
    %v745 = vadd.f32 %v679, %v713
    %v746 = vadd.f32 %v680, %v714
    %v747 = vadd.f32 %v681, %v715
    %v748 = vadd.f32 %v682, %v716
    %v749 = vadd.f32 %v683, %v717
    %v750 = vadd.f32 %v684, %v718
    %v751 = vadd.f32 %v685, %v719
    %s752 = sld [smem:[#allocation7 + $0xb]]
    %v753 = vstv %s752
    %v754 = vmul.f32 %v227, %v753
    %v755 = vmul.f32 %v228, %v753
    %v756 = vmul.f32 %v229, %v753
    %v757 = vmul.f32 %v230, %v753
    %v758 = vmul.f32 %v231, %v753
    %v759 = vmul.f32 %v232, %v753
    %v760 = vmul.f32 %v233, %v753
    %v761 = vmul.f32 %v234, %v753
    %v762 = vmul.f32 %v235, %v753
    %v763 = vmul.f32 %v236, %v753
    %v764 = vmul.f32 %v237, %v753
    %v765 = vmul.f32 %v238, %v753
    %v766 = vmul.f32 %v239, %v753
    %v767 = vmul.f32 %v240, %v753
    %v768 = vmul.f32 %v241, %v753
    %v769 = vmul.f32 %v242, %v753
    %v770 = vmul.f32 %v243, %v753
    %v771 = vmul.f32 %v244, %v753
    %v772 = vmul.f32 %v245, %v753
    %v773 = vmul.f32 %v246, %v753
    %v774 = vmul.f32 %v247, %v753
    %v775 = vmul.f32 %v248, %v753
    %v776 = vmul.f32 %v249, %v753
    %v777 = vmul.f32 %v250, %v753
    %v778 = vmul.f32 %v251, %v753
    %v779 = vmul.f32 %v252, %v753
    %v780 = vmul.f32 %v253, %v753
    %v781 = vmul.f32 %v254, %v753
    %v782 = vmul.f32 %v255, %v753
    %v783 = vmul.f32 %v256, %v753
    %v784 = vmul.f32 %v257, %v753
    %v785 = vmul.f32 %v258, %v753
    %v786 = vadd.f32 %v720, %v754
    %v787 = vadd.f32 %v721, %v755
    %v788 = vadd.f32 %v722, %v756
    %v789 = vadd.f32 %v723, %v757
    %v790 = vadd.f32 %v724, %v758
    %v791 = vadd.f32 %v725, %v759
    %v792 = vadd.f32 %v726, %v760
    %v793 = vadd.f32 %v727, %v761
    %v794 = vadd.f32 %v728, %v762
    %v795 = vadd.f32 %v729, %v763
    %v796 = vadd.f32 %v730, %v764
    %v797 = vadd.f32 %v731, %v765
    %v798 = vadd.f32 %v732, %v766
    %v799 = vadd.f32 %v733, %v767
    %v800 = vadd.f32 %v734, %v768
    %v801 = vadd.f32 %v735, %v769
    %v802 = vadd.f32 %v736, %v770
    %v803 = vadd.f32 %v737, %v771
    %v804 = vadd.f32 %v738, %v772
    %v805 = vadd.f32 %v739, %v773
    %v806 = vadd.f32 %v740, %v774
    %v807 = vadd.f32 %v741, %v775
    %v808 = vadd.f32 %v742, %v776
    %v809 = vadd.f32 %v743, %v777
    %v810 = vadd.f32 %v744, %v778
    %v811 = vadd.f32 %v745, %v779
    %v812 = vadd.f32 %v746, %v780
    %v813 = vadd.f32 %v747, %v781
    %v814 = vadd.f32 %v748, %v782
    %v815 = vadd.f32 %v749, %v783
    %v816 = vadd.f32 %v750, %v784
    %v817 = vadd.f32 %v751, %v785
    %s818 = sld [smem:[#allocation8 + $0x1]]
    %v819 = vstv %s818
    %v820 = vadd.f32 %v786, %v819
    %v821 = vadd.f32 %v787, %v819
    %v822 = vadd.f32 %v788, %v819
    %v823 = vadd.f32 %v789, %v819
    %v824 = vadd.f32 %v790, %v819
    %v825 = vadd.f32 %v791, %v819
    %v826 = vadd.f32 %v792, %v819
    %v827 = vadd.f32 %v793, %v819
    %v828 = vadd.f32 %v794, %v819
    %v829 = vadd.f32 %v795, %v819
    %v830 = vadd.f32 %v796, %v819
    %v831 = vadd.f32 %v797, %v819
    %v832 = vadd.f32 %v798, %v819
    %v833 = vadd.f32 %v799, %v819
    %v834 = vadd.f32 %v800, %v819
    %v835 = vadd.f32 %v801, %v819
    %v836 = vadd.f32 %v802, %v819
    %v837 = vadd.f32 %v803, %v819
    %v838 = vadd.f32 %v804, %v819
    %v839 = vadd.f32 %v805, %v819
    %v840 = vadd.f32 %v806, %v819
    %v841 = vadd.f32 %v807, %v819
    %v842 = vadd.f32 %v808, %v819
    %v843 = vadd.f32 %v809, %v819
    %v844 = vadd.f32 %v810, %v819
    %v845 = vadd.f32 %v811, %v819
    %v846 = vadd.f32 %v812, %v819
    %v847 = vadd.f32 %v813, %v819
    %v848 = vadd.f32 %v814, %v819
    %v849 = vadd.f32 %v815, %v819
    %v850 = vadd.f32 %v816, %v819
    %v851 = vadd.f32 %v817, %v819
    %v852 = vmax.f32 %v820, 0.0
    %v853 = vmax.f32 %v821, 0.0
    %v854 = vmax.f32 %v822, 0.0
    %v855 = vmax.f32 %v823, 0.0
    %v856 = vmax.f32 %v824, 0.0
    %v857 = vmax.f32 %v825, 0.0
    %v858 = vmax.f32 %v826, 0.0
    %v859 = vmax.f32 %v827, 0.0
    %v860 = vmax.f32 %v828, 0.0
    %v861 = vmax.f32 %v829, 0.0
    %v862 = vmax.f32 %v830, 0.0
    %v863 = vmax.f32 %v831, 0.0
    %v864 = vmax.f32 %v832, 0.0
    %v865 = vmax.f32 %v833, 0.0
    %v866 = vmax.f32 %v834, 0.0
    %v867 = vmax.f32 %v835, 0.0
    %v868 = vmax.f32 %v836, 0.0
    %v869 = vmax.f32 %v837, 0.0
    %v870 = vmax.f32 %v838, 0.0
    %v871 = vmax.f32 %v839, 0.0
    %v872 = vmax.f32 %v840, 0.0
    %v873 = vmax.f32 %v841, 0.0
    %v874 = vmax.f32 %v842, 0.0
    %v875 = vmax.f32 %v843, 0.0
    %v876 = vmax.f32 %v844, 0.0
    %v877 = vmax.f32 %v845, 0.0
    %v878 = vmax.f32 %v846, 0.0
    %v879 = vmax.f32 %v847, 0.0
    %v880 = vmax.f32 %v848, 0.0
    %v881 = vmax.f32 %v849, 0.0
    %v882 = vmax.f32 %v850, 0.0
    %v883 = vmax.f32 %v851, 0.0
    %884 = vset.pattern.permute.xlu0 1
    %885 = vperm.xlu0 %884, %v391
    %v886 = vpop.permute.xlu0 %885
    %888 = vset.pattern.permute.xlu0 1
    %889 = vperm.xlu0 %888, %v392
    %v890 = vpop.permute.xlu0 %889
    %892 = vset.pattern.permute.xlu0 1
    %893 = vperm.xlu0 %892, %v393
    %v894 = vpop.permute.xlu0 %893
    %896 = vset.pattern.permute.xlu0 1
    %897 = vperm.xlu0 %896, %v394
    %v898 = vpop.permute.xlu0 %897
    %900 = vset.pattern.permute.xlu0 1
    %901 = vperm.xlu0 %900, %v395
    %v902 = vpop.permute.xlu0 %901
    %904 = vset.pattern.permute.xlu0 1
    %905 = vperm.xlu0 %904, %v396
    %v906 = vpop.permute.xlu0 %905
    %908 = vset.pattern.permute.xlu0 1
    %909 = vperm.xlu0 %908, %v397
    %v910 = vpop.permute.xlu0 %909
    %912 = vset.pattern.permute.xlu0 1
    %913 = vperm.xlu0 %912, %v398
    %v914 = vpop.permute.xlu0 %913
    %916 = vset.pattern.permute.xlu0 1
    %917 = vperm.xlu0 %916, %v399
    %v918 = vpop.permute.xlu0 %917
    %920 = vset.pattern.permute.xlu0 1
    %921 = vperm.xlu0 %920, %v400
    %v922 = vpop.permute.xlu0 %921
    %924 = vset.pattern.permute.xlu0 1
    %925 = vperm.xlu0 %924, %v401
    %v926 = vpop.permute.xlu0 %925
    %928 = vset.pattern.permute.xlu0 1
    %929 = vperm.xlu0 %928, %v402
    %v930 = vpop.permute.xlu0 %929
    %932 = vset.pattern.permute.xlu0 1
    %933 = vperm.xlu0 %932, %v403
    %v934 = vpop.permute.xlu0 %933
    %936 = vset.pattern.permute.xlu0 1
    %937 = vperm.xlu0 %936, %v404
    %v938 = vpop.permute.xlu0 %937
    %940 = vset.pattern.permute.xlu0 1
    %941 = vperm.xlu0 %940, %v405
    %v942 = vpop.permute.xlu0 %941
    %944 = vset.pattern.permute.xlu0 1
    %945 = vperm.xlu0 %944, %v406
    %v946 = vpop.permute.xlu0 %945
    %948 = vset.pattern.permute.xlu0 1
    %949 = vperm.xlu0 %948, %v407
    %v950 = vpop.permute.xlu0 %949
    %952 = vset.pattern.permute.xlu0 1
    %953 = vperm.xlu0 %952, %v408
    %v954 = vpop.permute.xlu0 %953
    %956 = vset.pattern.permute.xlu0 1
    %957 = vperm.xlu0 %956, %v409
    %v958 = vpop.permute.xlu0 %957
    %960 = vset.pattern.permute.xlu0 1
    %961 = vperm.xlu0 %960, %v410
    %v962 = vpop.permute.xlu0 %961
    %964 = vset.pattern.permute.xlu0 1
    %965 = vperm.xlu0 %964, %v411
    %v966 = vpop.permute.xlu0 %965
    %968 = vset.pattern.permute.xlu0 1
    %969 = vperm.xlu0 %968, %v412
    %v970 = vpop.permute.xlu0 %969
    %972 = vset.pattern.permute.xlu0 1
    %973 = vperm.xlu0 %972, %v413
    %v974 = vpop.permute.xlu0 %973
    %976 = vset.pattern.permute.xlu0 1
    %977 = vperm.xlu0 %976, %v414
    %v978 = vpop.permute.xlu0 %977
    %980 = vset.pattern.permute.xlu0 1
    %981 = vperm.xlu0 %980, %v415
    %v982 = vpop.permute.xlu0 %981
    %984 = vset.pattern.permute.xlu0 1
    %985 = vperm.xlu0 %984, %v416
    %v986 = vpop.permute.xlu0 %985
    %988 = vset.pattern.permute.xlu0 1
    %989 = vperm.xlu0 %988, %v417
    %v990 = vpop.permute.xlu0 %989
    %992 = vset.pattern.permute.xlu0 1
    %993 = vperm.xlu0 %992, %v418
    %v994 = vpop.permute.xlu0 %993
    %996 = vset.pattern.permute.xlu0 1
    %997 = vperm.xlu0 %996, %v419
    %v998 = vpop.permute.xlu0 %997
    %1000 = vset.pattern.permute.xlu0 1
    %1001 = vperm.xlu0 %1000, %v420
    %v1002 = vpop.permute.xlu0 %1001
    %1004 = vset.pattern.permute.xlu0 1
    %1005 = vperm.xlu0 %1004, %v421
    %v1006 = vpop.permute.xlu0 %1005
    %1008 = vset.pattern.permute.xlu0 1
    %1009 = vperm.xlu0 %1008, %v422
    %v1010 = vpop.permute.xlu0 %1009
    %v1012 = vmul.f32 %v852, %v886
    %v1013 = vmul.f32 %v853, %v890
    %v1014 = vmul.f32 %v854, %v894
    %v1015 = vmul.f32 %v855, %v898
    %v1016 = vmul.f32 %v856, %v902
    %v1017 = vmul.f32 %v857, %v906
    %v1018 = vmul.f32 %v858, %v910
    %v1019 = vmul.f32 %v859, %v914
    %v1020 = vmul.f32 %v860, %v918
    %v1021 = vmul.f32 %v861, %v922
    %v1022 = vmul.f32 %v862, %v926
    %v1023 = vmul.f32 %v863, %v930
    %v1024 = vmul.f32 %v864, %v934
    %v1025 = vmul.f32 %v865, %v938
    %v1026 = vmul.f32 %v866, %v942
    %v1027 = vmul.f32 %v867, %v946
    %v1028 = vmul.f32 %v868, %v950
    %v1029 = vmul.f32 %v869, %v954
    %v1030 = vmul.f32 %v870, %v958
    %v1031 = vmul.f32 %v871, %v962
    %v1032 = vmul.f32 %v872, %v966
    %v1033 = vmul.f32 %v873, %v970
    %v1034 = vmul.f32 %v874, %v974
    %v1035 = vmul.f32 %v875, %v978
    %v1036 = vmul.f32 %v876, %v982
    %v1037 = vmul.f32 %v877, %v986
    %v1038 = vmul.f32 %v878, %v990
    %v1039 = vmul.f32 %v879, %v994
    %v1040 = vmul.f32 %v880, %v998
    %v1041 = vmul.f32 %v881, %v1002
    %v1042 = vmul.f32 %v882, %v1006
    %v1043 = vmul.f32 %v883, %v1010
    %v1044 = vadd.f32 %v1012, %v1013
    %v1045 = vadd.f32 %v1044, %v1014
    %v1046 = vadd.f32 %v1045, %v1015
    %v1047 = vadd.f32 %v1046, %v1016
    %v1048 = vadd.f32 %v1047, %v1017
    %v1049 = vadd.f32 %v1048, %v1018
    %v1050 = vadd.f32 %v1049, %v1019
    %v1051 = vadd.f32 %v1050, %v1020
    %v1052 = vadd.f32 %v1051, %v1021
    %v1053 = vadd.f32 %v1052, %v1022
    %v1054 = vadd.f32 %v1053, %v1023
    %v1055 = vadd.f32 %v1054, %v1024
    %v1056 = vadd.f32 %v1055, %v1025
    %v1057 = vadd.f32 %v1056, %v1026
    %v1058 = vadd.f32 %v1057, %v1027
    %v1059 = vadd.f32 %v1058, %v1028
    %v1060 = vadd.f32 %v1059, %v1029
    %v1061 = vadd.f32 %v1060, %v1030
    %v1062 = vadd.f32 %v1061, %v1031
    %v1063 = vadd.f32 %v1062, %v1032
    %v1064 = vadd.f32 %v1063, %v1033
    %v1065 = vadd.f32 %v1064, %v1034
    %v1066 = vadd.f32 %v1065, %v1035
    %v1067 = vadd.f32 %v1066, %v1036
    %v1068 = vadd.f32 %v1067, %v1037
    %v1069 = vadd.f32 %v1068, %v1038
    %v1070 = vadd.f32 %v1069, %v1039
    %v1071 = vadd.f32 %v1070, %v1040
    %v1072 = vadd.f32 %v1071, %v1041
    %v1073 = vadd.f32 %v1072, %v1042
    %v1074 = vadd.f32 %v1073, %v1043
    %v1075 = vrot.slane %v1074, 4
    %v1076 = vadd.f32 %v1074, %v1075
    %v1077 = vrot.slane %v1076, 2
    %v1078 = vadd.f32 %v1076, %v1077
    %v1079 = vrot.slane %v1078, 1
    %v1080 = vadd.f32 %v1078, %v1079
    %v1081 = vadd.f32 %v651, %v1080
    %s1082 = sld [smem:[#allocation7 + $0x2]]
    %v1083 = vstv %s1082
    %v1084 = vmul.f32 %v61, %v1083
    %v1085 = vmul.f32 %v62, %v1083
    %v1086 = vmul.f32 %v63, %v1083
    %v1087 = vmul.f32 %v64, %v1083
    %v1088 = vmul.f32 %v65, %v1083
    %v1089 = vmul.f32 %v66, %v1083
    %v1090 = vmul.f32 %v67, %v1083
    %v1091 = vmul.f32 %v68, %v1083
    %v1092 = vmul.f32 %v69, %v1083
    %v1093 = vmul.f32 %v70, %v1083
    %v1094 = vmul.f32 %v71, %v1083
    %v1095 = vmul.f32 %v72, %v1083
    %v1096 = vmul.f32 %v73, %v1083
    %v1097 = vmul.f32 %v74, %v1083
    %v1098 = vmul.f32 %v75, %v1083
    %v1099 = vmul.f32 %v76, %v1083
    %v1100 = vmul.f32 %v77, %v1083
    %v1101 = vmul.f32 %v78, %v1083
    %v1102 = vmul.f32 %v79, %v1083
    %v1103 = vmul.f32 %v80, %v1083
    %v1104 = vmul.f32 %v81, %v1083
    %v1105 = vmul.f32 %v82, %v1083
    %v1106 = vmul.f32 %v83, %v1083
    %v1107 = vmul.f32 %v84, %v1083
    %v1108 = vmul.f32 %v85, %v1083
    %v1109 = vmul.f32 %v86, %v1083
    %v1110 = vmul.f32 %v87, %v1083
    %v1111 = vmul.f32 %v88, %v1083
    %v1112 = vmul.f32 %v89, %v1083
    %v1113 = vmul.f32 %v90, %v1083
    %v1114 = vmul.f32 %v91, %v1083
    %v1115 = vmul.f32 %v92, %v1083
    %s1116 = sld [smem:[#allocation7 + $0x7]]
    %v1117 = vstv %s1116
    %v1118 = vmul.f32 %v128, %v1117
    %v1119 = vmul.f32 %v129, %v1117
    %v1120 = vmul.f32 %v130, %v1117
    %v1121 = vmul.f32 %v131, %v1117
    %v1122 = vmul.f32 %v132, %v1117
    %v1123 = vmul.f32 %v133, %v1117
    %v1124 = vmul.f32 %v134, %v1117
    %v1125 = vmul.f32 %v135, %v1117
    %v1126 = vmul.f32 %v136, %v1117
    %v1127 = vmul.f32 %v137, %v1117
    %v1128 = vmul.f32 %v138, %v1117
    %v1129 = vmul.f32 %v139, %v1117
    %v1130 = vmul.f32 %v140, %v1117
    %v1131 = vmul.f32 %v141, %v1117
    %v1132 = vmul.f32 %v142, %v1117
    %v1133 = vmul.f32 %v143, %v1117
    %v1134 = vmul.f32 %v144, %v1117
    %v1135 = vmul.f32 %v145, %v1117
    %v1136 = vmul.f32 %v146, %v1117
    %v1137 = vmul.f32 %v147, %v1117
    %v1138 = vmul.f32 %v148, %v1117
    %v1139 = vmul.f32 %v149, %v1117
    %v1140 = vmul.f32 %v150, %v1117
    %v1141 = vmul.f32 %v151, %v1117
    %v1142 = vmul.f32 %v152, %v1117
    %v1143 = vmul.f32 %v153, %v1117
    %v1144 = vmul.f32 %v154, %v1117
    %v1145 = vmul.f32 %v155, %v1117
    %v1146 = vmul.f32 %v156, %v1117
    %v1147 = vmul.f32 %v157, %v1117
    %v1148 = vmul.f32 %v158, %v1117
    %v1149 = vmul.f32 %v159, %v1117
    %v1150 = vadd.f32 %v1084, %v1118
    %v1151 = vadd.f32 %v1085, %v1119
    %v1152 = vadd.f32 %v1086, %v1120
    %v1153 = vadd.f32 %v1087, %v1121
    %v1154 = vadd.f32 %v1088, %v1122
    %v1155 = vadd.f32 %v1089, %v1123
    %v1156 = vadd.f32 %v1090, %v1124
    %v1157 = vadd.f32 %v1091, %v1125
    %v1158 = vadd.f32 %v1092, %v1126
    %v1159 = vadd.f32 %v1093, %v1127
    %v1160 = vadd.f32 %v1094, %v1128
    %v1161 = vadd.f32 %v1095, %v1129
    %v1162 = vadd.f32 %v1096, %v1130
    %v1163 = vadd.f32 %v1097, %v1131
    %v1164 = vadd.f32 %v1098, %v1132
    %v1165 = vadd.f32 %v1099, %v1133
    %v1166 = vadd.f32 %v1100, %v1134
    %v1167 = vadd.f32 %v1101, %v1135
    %v1168 = vadd.f32 %v1102, %v1136
    %v1169 = vadd.f32 %v1103, %v1137
    %v1170 = vadd.f32 %v1104, %v1138
    %v1171 = vadd.f32 %v1105, %v1139
    %v1172 = vadd.f32 %v1106, %v1140
    %v1173 = vadd.f32 %v1107, %v1141
    %v1174 = vadd.f32 %v1108, %v1142
    %v1175 = vadd.f32 %v1109, %v1143
    %v1176 = vadd.f32 %v1110, %v1144
    %v1177 = vadd.f32 %v1111, %v1145
    %v1178 = vadd.f32 %v1112, %v1146
    %v1179 = vadd.f32 %v1113, %v1147
    %v1180 = vadd.f32 %v1114, %v1148
    %v1181 = vadd.f32 %v1115, %v1149
    %s1182 = sld [smem:[#allocation7 + $0xc]]
    %v1183 = vstv %s1182
    %v1184 = vmul.f32 %v227, %v1183
    %v1185 = vmul.f32 %v228, %v1183
    %v1186 = vmul.f32 %v229, %v1183
    %v1187 = vmul.f32 %v230, %v1183
    %v1188 = vmul.f32 %v231, %v1183
    %v1189 = vmul.f32 %v232, %v1183
    %v1190 = vmul.f32 %v233, %v1183
    %v1191 = vmul.f32 %v234, %v1183
    %v1192 = vmul.f32 %v235, %v1183
    %v1193 = vmul.f32 %v236, %v1183
    %v1194 = vmul.f32 %v237, %v1183
    %v1195 = vmul.f32 %v238, %v1183
    %v1196 = vmul.f32 %v239, %v1183
    %v1197 = vmul.f32 %v240, %v1183
    %v1198 = vmul.f32 %v241, %v1183
    %v1199 = vmul.f32 %v242, %v1183
    %v1200 = vmul.f32 %v243, %v1183
    %v1201 = vmul.f32 %v244, %v1183
    %v1202 = vmul.f32 %v245, %v1183
    %v1203 = vmul.f32 %v246, %v1183
    %v1204 = vmul.f32 %v247, %v1183
    %v1205 = vmul.f32 %v248, %v1183
    %v1206 = vmul.f32 %v249, %v1183
    %v1207 = vmul.f32 %v250, %v1183
    %v1208 = vmul.f32 %v251, %v1183
    %v1209 = vmul.f32 %v252, %v1183
    %v1210 = vmul.f32 %v253, %v1183
    %v1211 = vmul.f32 %v254, %v1183
    %v1212 = vmul.f32 %v255, %v1183
    %v1213 = vmul.f32 %v256, %v1183
    %v1214 = vmul.f32 %v257, %v1183
    %v1215 = vmul.f32 %v258, %v1183
    %v1216 = vadd.f32 %v1150, %v1184
    %v1217 = vadd.f32 %v1151, %v1185
    %v1218 = vadd.f32 %v1152, %v1186
    %v1219 = vadd.f32 %v1153, %v1187
    %v1220 = vadd.f32 %v1154, %v1188
    %v1221 = vadd.f32 %v1155, %v1189
    %v1222 = vadd.f32 %v1156, %v1190
    %v1223 = vadd.f32 %v1157, %v1191
    %v1224 = vadd.f32 %v1158, %v1192
    %v1225 = vadd.f32 %v1159, %v1193
    %v1226 = vadd.f32 %v1160, %v1194
    %v1227 = vadd.f32 %v1161, %v1195
    %v1228 = vadd.f32 %v1162, %v1196
    %v1229 = vadd.f32 %v1163, %v1197
    %v1230 = vadd.f32 %v1164, %v1198
    %v1231 = vadd.f32 %v1165, %v1199
    %v1232 = vadd.f32 %v1166, %v1200
    %v1233 = vadd.f32 %v1167, %v1201
    %v1234 = vadd.f32 %v1168, %v1202
    %v1235 = vadd.f32 %v1169, %v1203
    %v1236 = vadd.f32 %v1170, %v1204
    %v1237 = vadd.f32 %v1171, %v1205
    %v1238 = vadd.f32 %v1172, %v1206
    %v1239 = vadd.f32 %v1173, %v1207
    %v1240 = vadd.f32 %v1174, %v1208
    %v1241 = vadd.f32 %v1175, %v1209
    %v1242 = vadd.f32 %v1176, %v1210
    %v1243 = vadd.f32 %v1177, %v1211
    %v1244 = vadd.f32 %v1178, %v1212
    %v1245 = vadd.f32 %v1179, %v1213
    %v1246 = vadd.f32 %v1180, %v1214
    %v1247 = vadd.f32 %v1181, %v1215
    %s1248 = sld [smem:[#allocation8 + $0x2]]
    %v1249 = vstv %s1248
    %v1250 = vadd.f32 %v1216, %v1249
    %v1251 = vadd.f32 %v1217, %v1249
    %v1252 = vadd.f32 %v1218, %v1249
    %v1253 = vadd.f32 %v1219, %v1249
    %v1254 = vadd.f32 %v1220, %v1249
    %v1255 = vadd.f32 %v1221, %v1249
    %v1256 = vadd.f32 %v1222, %v1249
    %v1257 = vadd.f32 %v1223, %v1249
    %v1258 = vadd.f32 %v1224, %v1249
    %v1259 = vadd.f32 %v1225, %v1249
    %v1260 = vadd.f32 %v1226, %v1249
    %v1261 = vadd.f32 %v1227, %v1249
    %v1262 = vadd.f32 %v1228, %v1249
    %v1263 = vadd.f32 %v1229, %v1249
    %v1264 = vadd.f32 %v1230, %v1249
    %v1265 = vadd.f32 %v1231, %v1249
    %v1266 = vadd.f32 %v1232, %v1249
    %v1267 = vadd.f32 %v1233, %v1249
    %v1268 = vadd.f32 %v1234, %v1249
    %v1269 = vadd.f32 %v1235, %v1249
    %v1270 = vadd.f32 %v1236, %v1249
    %v1271 = vadd.f32 %v1237, %v1249
    %v1272 = vadd.f32 %v1238, %v1249
    %v1273 = vadd.f32 %v1239, %v1249
    %v1274 = vadd.f32 %v1240, %v1249
    %v1275 = vadd.f32 %v1241, %v1249
    %v1276 = vadd.f32 %v1242, %v1249
    %v1277 = vadd.f32 %v1243, %v1249
    %v1278 = vadd.f32 %v1244, %v1249
    %v1279 = vadd.f32 %v1245, %v1249
    %v1280 = vadd.f32 %v1246, %v1249
    %v1281 = vadd.f32 %v1247, %v1249
    %v1282 = vmax.f32 %v1250, 0.0
    %v1283 = vmax.f32 %v1251, 0.0
    %v1284 = vmax.f32 %v1252, 0.0
    %v1285 = vmax.f32 %v1253, 0.0
    %v1286 = vmax.f32 %v1254, 0.0
    %v1287 = vmax.f32 %v1255, 0.0
    %v1288 = vmax.f32 %v1256, 0.0
    %v1289 = vmax.f32 %v1257, 0.0
    %v1290 = vmax.f32 %v1258, 0.0
    %v1291 = vmax.f32 %v1259, 0.0
    %v1292 = vmax.f32 %v1260, 0.0
    %v1293 = vmax.f32 %v1261, 0.0
    %v1294 = vmax.f32 %v1262, 0.0
    %v1295 = vmax.f32 %v1263, 0.0
    %v1296 = vmax.f32 %v1264, 0.0
    %v1297 = vmax.f32 %v1265, 0.0
    %v1298 = vmax.f32 %v1266, 0.0
    %v1299 = vmax.f32 %v1267, 0.0
    %v1300 = vmax.f32 %v1268, 0.0
    %v1301 = vmax.f32 %v1269, 0.0
    %v1302 = vmax.f32 %v1270, 0.0
    %v1303 = vmax.f32 %v1271, 0.0
    %v1304 = vmax.f32 %v1272, 0.0
    %v1305 = vmax.f32 %v1273, 0.0
    %v1306 = vmax.f32 %v1274, 0.0
    %v1307 = vmax.f32 %v1275, 0.0
    %v1308 = vmax.f32 %v1276, 0.0
    %v1309 = vmax.f32 %v1277, 0.0
    %v1310 = vmax.f32 %v1278, 0.0
    %v1311 = vmax.f32 %v1279, 0.0
    %v1312 = vmax.f32 %v1280, 0.0
    %v1313 = vmax.f32 %v1281, 0.0
    %1314 = vset.pattern.permute.xlu0 2
    %1315 = vperm.xlu0 %1314, %v391
    %v1316 = vpop.permute.xlu0 %1315
    %1318 = vset.pattern.permute.xlu0 2
    %1319 = vperm.xlu0 %1318, %v392
    %v1320 = vpop.permute.xlu0 %1319
    %1322 = vset.pattern.permute.xlu0 2
    %1323 = vperm.xlu0 %1322, %v393
    %v1324 = vpop.permute.xlu0 %1323
    %1326 = vset.pattern.permute.xlu0 2
    %1327 = vperm.xlu0 %1326, %v394
    %v1328 = vpop.permute.xlu0 %1327
    %1330 = vset.pattern.permute.xlu0 2
    %1331 = vperm.xlu0 %1330, %v395
    %v1332 = vpop.permute.xlu0 %1331
    %1334 = vset.pattern.permute.xlu0 2
    %1335 = vperm.xlu0 %1334, %v396
    %v1336 = vpop.permute.xlu0 %1335
    %1338 = vset.pattern.permute.xlu0 2
    %1339 = vperm.xlu0 %1338, %v397
    %v1340 = vpop.permute.xlu0 %1339
    %1342 = vset.pattern.permute.xlu0 2
    %1343 = vperm.xlu0 %1342, %v398
    %v1344 = vpop.permute.xlu0 %1343
    %1346 = vset.pattern.permute.xlu0 2
    %1347 = vperm.xlu0 %1346, %v399
    %v1348 = vpop.permute.xlu0 %1347
    %1350 = vset.pattern.permute.xlu0 2
    %1351 = vperm.xlu0 %1350, %v400
    %v1352 = vpop.permute.xlu0 %1351
    %1354 = vset.pattern.permute.xlu0 2
    %1355 = vperm.xlu0 %1354, %v401
    %v1356 = vpop.permute.xlu0 %1355
    %1358 = vset.pattern.permute.xlu0 2
    %1359 = vperm.xlu0 %1358, %v402
    %v1360 = vpop.permute.xlu0 %1359
    %1362 = vset.pattern.permute.xlu0 2
    %1363 = vperm.xlu0 %1362, %v403
    %v1364 = vpop.permute.xlu0 %1363
    %1366 = vset.pattern.permute.xlu0 2
    %1367 = vperm.xlu0 %1366, %v404
    %v1368 = vpop.permute.xlu0 %1367
    %1370 = vset.pattern.permute.xlu0 2
    %1371 = vperm.xlu0 %1370, %v405
    %v1372 = vpop.permute.xlu0 %1371
    %1374 = vset.pattern.permute.xlu0 2
    %1375 = vperm.xlu0 %1374, %v406
    %v1376 = vpop.permute.xlu0 %1375
    %1378 = vset.pattern.permute.xlu0 2
    %1379 = vperm.xlu0 %1378, %v407
    %v1380 = vpop.permute.xlu0 %1379
    %1382 = vset.pattern.permute.xlu0 2
    %1383 = vperm.xlu0 %1382, %v408
    %v1384 = vpop.permute.xlu0 %1383
    %1386 = vset.pattern.permute.xlu0 2
    %1387 = vperm.xlu0 %1386, %v409
    %v1388 = vpop.permute.xlu0 %1387
    %1390 = vset.pattern.permute.xlu0 2
    %1391 = vperm.xlu0 %1390, %v410
    %v1392 = vpop.permute.xlu0 %1391
    %1394 = vset.pattern.permute.xlu0 2
    %1395 = vperm.xlu0 %1394, %v411
    %v1396 = vpop.permute.xlu0 %1395
    %1398 = vset.pattern.permute.xlu0 2
    %1399 = vperm.xlu0 %1398, %v412
    %v1400 = vpop.permute.xlu0 %1399
    %1402 = vset.pattern.permute.xlu0 2
    %1403 = vperm.xlu0 %1402, %v413
    %v1404 = vpop.permute.xlu0 %1403
    %1406 = vset.pattern.permute.xlu0 2
    %1407 = vperm.xlu0 %1406, %v414
    %v1408 = vpop.permute.xlu0 %1407
    %1410 = vset.pattern.permute.xlu0 2
    %1411 = vperm.xlu0 %1410, %v415
    %v1412 = vpop.permute.xlu0 %1411
    %1414 = vset.pattern.permute.xlu0 2
    %1415 = vperm.xlu0 %1414, %v416
    %v1416 = vpop.permute.xlu0 %1415
    %1418 = vset.pattern.permute.xlu0 2
    %1419 = vperm.xlu0 %1418, %v417
    %v1420 = vpop.permute.xlu0 %1419
    %1422 = vset.pattern.permute.xlu0 2
    %1423 = vperm.xlu0 %1422, %v418
    %v1424 = vpop.permute.xlu0 %1423
    %1426 = vset.pattern.permute.xlu0 2
    %1427 = vperm.xlu0 %1426, %v419
    %v1428 = vpop.permute.xlu0 %1427
    %1430 = vset.pattern.permute.xlu0 2
    %1431 = vperm.xlu0 %1430, %v420
    %v1432 = vpop.permute.xlu0 %1431
    %1434 = vset.pattern.permute.xlu0 2
    %1435 = vperm.xlu0 %1434, %v421
    %v1436 = vpop.permute.xlu0 %1435
    %1438 = vset.pattern.permute.xlu0 2
    %1439 = vperm.xlu0 %1438, %v422
    %v1440 = vpop.permute.xlu0 %1439
    %v1442 = vmul.f32 %v1282, %v1316
    %v1443 = vmul.f32 %v1283, %v1320
    %v1444 = vmul.f32 %v1284, %v1324
    %v1445 = vmul.f32 %v1285, %v1328
    %v1446 = vmul.f32 %v1286, %v1332
    %v1447 = vmul.f32 %v1287, %v1336
    %v1448 = vmul.f32 %v1288, %v1340
    %v1449 = vmul.f32 %v1289, %v1344
    %v1450 = vmul.f32 %v1290, %v1348
    %v1451 = vmul.f32 %v1291, %v1352
    %v1452 = vmul.f32 %v1292, %v1356
    %v1453 = vmul.f32 %v1293, %v1360
    %v1454 = vmul.f32 %v1294, %v1364
    %v1455 = vmul.f32 %v1295, %v1368
    %v1456 = vmul.f32 %v1296, %v1372
    %v1457 = vmul.f32 %v1297, %v1376
    %v1458 = vmul.f32 %v1298, %v1380
    %v1459 = vmul.f32 %v1299, %v1384
    %v1460 = vmul.f32 %v1300, %v1388
    %v1461 = vmul.f32 %v1301, %v1392
    %v1462 = vmul.f32 %v1302, %v1396
    %v1463 = vmul.f32 %v1303, %v1400
    %v1464 = vmul.f32 %v1304, %v1404
    %v1465 = vmul.f32 %v1305, %v1408
    %v1466 = vmul.f32 %v1306, %v1412
    %v1467 = vmul.f32 %v1307, %v1416
    %v1468 = vmul.f32 %v1308, %v1420
    %v1469 = vmul.f32 %v1309, %v1424
    %v1470 = vmul.f32 %v1310, %v1428
    %v1471 = vmul.f32 %v1311, %v1432
    %v1472 = vmul.f32 %v1312, %v1436
    %v1473 = vmul.f32 %v1313, %v1440
    %v1474 = vadd.f32 %v1442, %v1443
    %v1475 = vadd.f32 %v1474, %v1444
    %v1476 = vadd.f32 %v1475, %v1445
    %v1477 = vadd.f32 %v1476, %v1446
    %v1478 = vadd.f32 %v1477, %v1447
    %v1479 = vadd.f32 %v1478, %v1448
    %v1480 = vadd.f32 %v1479, %v1449
    %v1481 = vadd.f32 %v1480, %v1450
    %v1482 = vadd.f32 %v1481, %v1451
    %v1483 = vadd.f32 %v1482, %v1452
    %v1484 = vadd.f32 %v1483, %v1453
    %v1485 = vadd.f32 %v1484, %v1454
    %v1486 = vadd.f32 %v1485, %v1455
    %v1487 = vadd.f32 %v1486, %v1456
    %v1488 = vadd.f32 %v1487, %v1457
    %v1489 = vadd.f32 %v1488, %v1458
    %v1490 = vadd.f32 %v1489, %v1459
    %v1491 = vadd.f32 %v1490, %v1460
    %v1492 = vadd.f32 %v1491, %v1461
    %v1493 = vadd.f32 %v1492, %v1462
    %v1494 = vadd.f32 %v1493, %v1463
    %v1495 = vadd.f32 %v1494, %v1464
    %v1496 = vadd.f32 %v1495, %v1465
    %v1497 = vadd.f32 %v1496, %v1466
    %v1498 = vadd.f32 %v1497, %v1467
    %v1499 = vadd.f32 %v1498, %v1468
    %v1500 = vadd.f32 %v1499, %v1469
    %v1501 = vadd.f32 %v1500, %v1470
    %v1502 = vadd.f32 %v1501, %v1471
    %v1503 = vadd.f32 %v1502, %v1472
    %v1504 = vadd.f32 %v1503, %v1473
    %v1505 = vrot.slane %v1504, 4
    %v1506 = vadd.f32 %v1504, %v1505
    %v1507 = vrot.slane %v1506, 2
    %v1508 = vadd.f32 %v1506, %v1507
    %v1509 = vrot.slane %v1508, 1
    %v1510 = vadd.f32 %v1508, %v1509
    %v1511 = vadd.f32 %v1081, %v1510
    %s1512 = sld [smem:[#allocation7 + $0x3]]
    %v1513 = vstv %s1512
    %v1514 = vmul.f32 %v61, %v1513
    %v1515 = vmul.f32 %v62, %v1513
    %v1516 = vmul.f32 %v63, %v1513
    %v1517 = vmul.f32 %v64, %v1513
    %v1518 = vmul.f32 %v65, %v1513
    %v1519 = vmul.f32 %v66, %v1513
    %v1520 = vmul.f32 %v67, %v1513
    %v1521 = vmul.f32 %v68, %v1513
    %v1522 = vmul.f32 %v69, %v1513
    %v1523 = vmul.f32 %v70, %v1513
    %v1524 = vmul.f32 %v71, %v1513
    %v1525 = vmul.f32 %v72, %v1513
    %v1526 = vmul.f32 %v73, %v1513
    %v1527 = vmul.f32 %v74, %v1513
    %v1528 = vmul.f32 %v75, %v1513
    %v1529 = vmul.f32 %v76, %v1513
    %v1530 = vmul.f32 %v77, %v1513
    %v1531 = vmul.f32 %v78, %v1513
    %v1532 = vmul.f32 %v79, %v1513
    %v1533 = vmul.f32 %v80, %v1513
    %v1534 = vmul.f32 %v81, %v1513
    %v1535 = vmul.f32 %v82, %v1513
    %v1536 = vmul.f32 %v83, %v1513
    %v1537 = vmul.f32 %v84, %v1513
    %v1538 = vmul.f32 %v85, %v1513
    %v1539 = vmul.f32 %v86, %v1513
    %v1540 = vmul.f32 %v87, %v1513
    %v1541 = vmul.f32 %v88, %v1513
    %v1542 = vmul.f32 %v89, %v1513
    %v1543 = vmul.f32 %v90, %v1513
    %v1544 = vmul.f32 %v91, %v1513
    %v1545 = vmul.f32 %v92, %v1513
    %s1546 = sld [smem:[#allocation7 + $0x8]]
    %v1547 = vstv %s1546
    %v1548 = vmul.f32 %v128, %v1547
    %v1549 = vmul.f32 %v129, %v1547
    %v1550 = vmul.f32 %v130, %v1547
    %v1551 = vmul.f32 %v131, %v1547
    %v1552 = vmul.f32 %v132, %v1547
    %v1553 = vmul.f32 %v133, %v1547
    %v1554 = vmul.f32 %v134, %v1547
    %v1555 = vmul.f32 %v135, %v1547
    %v1556 = vmul.f32 %v136, %v1547
    %v1557 = vmul.f32 %v137, %v1547
    %v1558 = vmul.f32 %v138, %v1547
    %v1559 = vmul.f32 %v139, %v1547
    %v1560 = vmul.f32 %v140, %v1547
    %v1561 = vmul.f32 %v141, %v1547
    %v1562 = vmul.f32 %v142, %v1547
    %v1563 = vmul.f32 %v143, %v1547
    %v1564 = vmul.f32 %v144, %v1547
    %v1565 = vmul.f32 %v145, %v1547
    %v1566 = vmul.f32 %v146, %v1547
    %v1567 = vmul.f32 %v147, %v1547
    %v1568 = vmul.f32 %v148, %v1547
    %v1569 = vmul.f32 %v149, %v1547
    %v1570 = vmul.f32 %v150, %v1547
    %v1571 = vmul.f32 %v151, %v1547
    %v1572 = vmul.f32 %v152, %v1547
    %v1573 = vmul.f32 %v153, %v1547
    %v1574 = vmul.f32 %v154, %v1547
    %v1575 = vmul.f32 %v155, %v1547
    %v1576 = vmul.f32 %v156, %v1547
    %v1577 = vmul.f32 %v157, %v1547
    %v1578 = vmul.f32 %v158, %v1547
    %v1579 = vmul.f32 %v159, %v1547
    %v1580 = vadd.f32 %v1514, %v1548
    %v1581 = vadd.f32 %v1515, %v1549
    %v1582 = vadd.f32 %v1516, %v1550
    %v1583 = vadd.f32 %v1517, %v1551
    %v1584 = vadd.f32 %v1518, %v1552
    %v1585 = vadd.f32 %v1519, %v1553
    %v1586 = vadd.f32 %v1520, %v1554
    %v1587 = vadd.f32 %v1521, %v1555
    %v1588 = vadd.f32 %v1522, %v1556
    %v1589 = vadd.f32 %v1523, %v1557
    %v1590 = vadd.f32 %v1524, %v1558
    %v1591 = vadd.f32 %v1525, %v1559
    %v1592 = vadd.f32 %v1526, %v1560
    %v1593 = vadd.f32 %v1527, %v1561
    %v1594 = vadd.f32 %v1528, %v1562
    %v1595 = vadd.f32 %v1529, %v1563
    %v1596 = vadd.f32 %v1530, %v1564
    %v1597 = vadd.f32 %v1531, %v1565
    %v1598 = vadd.f32 %v1532, %v1566
    %v1599 = vadd.f32 %v1533, %v1567
    %v1600 = vadd.f32 %v1534, %v1568
    %v1601 = vadd.f32 %v1535, %v1569
    %v1602 = vadd.f32 %v1536, %v1570
    %v1603 = vadd.f32 %v1537, %v1571
    %v1604 = vadd.f32 %v1538, %v1572
    %v1605 = vadd.f32 %v1539, %v1573
    %v1606 = vadd.f32 %v1540, %v1574
    %v1607 = vadd.f32 %v1541, %v1575
    %v1608 = vadd.f32 %v1542, %v1576
    %v1609 = vadd.f32 %v1543, %v1577
    %v1610 = vadd.f32 %v1544, %v1578
    %v1611 = vadd.f32 %v1545, %v1579
    %s1612 = sld [smem:[#allocation7 + $0xd]]
    %v1613 = vstv %s1612
    %v1614 = vmul.f32 %v227, %v1613
    %v1615 = vmul.f32 %v228, %v1613
    %v1616 = vmul.f32 %v229, %v1613
    %v1617 = vmul.f32 %v230, %v1613
    %v1618 = vmul.f32 %v231, %v1613
    %v1619 = vmul.f32 %v232, %v1613
    %v1620 = vmul.f32 %v233, %v1613
    %v1621 = vmul.f32 %v234, %v1613
    %v1622 = vmul.f32 %v235, %v1613
    %v1623 = vmul.f32 %v236, %v1613
    %v1624 = vmul.f32 %v237, %v1613
    %v1625 = vmul.f32 %v238, %v1613
    %v1626 = vmul.f32 %v239, %v1613
    %v1627 = vmul.f32 %v240, %v1613
    %v1628 = vmul.f32 %v241, %v1613
    %v1629 = vmul.f32 %v242, %v1613
    %v1630 = vmul.f32 %v243, %v1613
    %v1631 = vmul.f32 %v244, %v1613
    %v1632 = vmul.f32 %v245, %v1613
    %v1633 = vmul.f32 %v246, %v1613
    %v1634 = vmul.f32 %v247, %v1613
    %v1635 = vmul.f32 %v248, %v1613
    %v1636 = vmul.f32 %v249, %v1613
    %v1637 = vmul.f32 %v250, %v1613
    %v1638 = vmul.f32 %v251, %v1613
    %v1639 = vmul.f32 %v252, %v1613
    %v1640 = vmul.f32 %v253, %v1613
    %v1641 = vmul.f32 %v254, %v1613
    %v1642 = vmul.f32 %v255, %v1613
    %v1643 = vmul.f32 %v256, %v1613
    %v1644 = vmul.f32 %v257, %v1613
    %v1645 = vmul.f32 %v258, %v1613
    %v1646 = vadd.f32 %v1580, %v1614
    %v1647 = vadd.f32 %v1581, %v1615
    %v1648 = vadd.f32 %v1582, %v1616
    %v1649 = vadd.f32 %v1583, %v1617
    %v1650 = vadd.f32 %v1584, %v1618
    %v1651 = vadd.f32 %v1585, %v1619
    %v1652 = vadd.f32 %v1586, %v1620
    %v1653 = vadd.f32 %v1587, %v1621
    %v1654 = vadd.f32 %v1588, %v1622
    %v1655 = vadd.f32 %v1589, %v1623
    %v1656 = vadd.f32 %v1590, %v1624
    %v1657 = vadd.f32 %v1591, %v1625
    %v1658 = vadd.f32 %v1592, %v1626
    %v1659 = vadd.f32 %v1593, %v1627
    %v1660 = vadd.f32 %v1594, %v1628
    %v1661 = vadd.f32 %v1595, %v1629
    %v1662 = vadd.f32 %v1596, %v1630
    %v1663 = vadd.f32 %v1597, %v1631
    %v1664 = vadd.f32 %v1598, %v1632
    %v1665 = vadd.f32 %v1599, %v1633
    %v1666 = vadd.f32 %v1600, %v1634
    %v1667 = vadd.f32 %v1601, %v1635
    %v1668 = vadd.f32 %v1602, %v1636
    %v1669 = vadd.f32 %v1603, %v1637
    %v1670 = vadd.f32 %v1604, %v1638
    %v1671 = vadd.f32 %v1605, %v1639
    %v1672 = vadd.f32 %v1606, %v1640
    %v1673 = vadd.f32 %v1607, %v1641
    %v1674 = vadd.f32 %v1608, %v1642
    %v1675 = vadd.f32 %v1609, %v1643
    %v1676 = vadd.f32 %v1610, %v1644
    %v1677 = vadd.f32 %v1611, %v1645
    %s1678 = sld [smem:[#allocation8 + $0x3]]
    %v1679 = vstv %s1678
    %v1680 = vadd.f32 %v1646, %v1679
    %v1681 = vadd.f32 %v1647, %v1679
    %v1682 = vadd.f32 %v1648, %v1679
    %v1683 = vadd.f32 %v1649, %v1679
    %v1684 = vadd.f32 %v1650, %v1679
    %v1685 = vadd.f32 %v1651, %v1679
    %v1686 = vadd.f32 %v1652, %v1679
    %v1687 = vadd.f32 %v1653, %v1679
    %v1688 = vadd.f32 %v1654, %v1679
    %v1689 = vadd.f32 %v1655, %v1679
    %v1690 = vadd.f32 %v1656, %v1679
    %v1691 = vadd.f32 %v1657, %v1679
    %v1692 = vadd.f32 %v1658, %v1679
    %v1693 = vadd.f32 %v1659, %v1679
    %v1694 = vadd.f32 %v1660, %v1679
    %v1695 = vadd.f32 %v1661, %v1679
    %v1696 = vadd.f32 %v1662, %v1679
    %v1697 = vadd.f32 %v1663, %v1679
    %v1698 = vadd.f32 %v1664, %v1679
    %v1699 = vadd.f32 %v1665, %v1679
    %v1700 = vadd.f32 %v1666, %v1679
    %v1701 = vadd.f32 %v1667, %v1679
    %v1702 = vadd.f32 %v1668, %v1679
    %v1703 = vadd.f32 %v1669, %v1679
    %v1704 = vadd.f32 %v1670, %v1679
    %v1705 = vadd.f32 %v1671, %v1679
    %v1706 = vadd.f32 %v1672, %v1679
    %v1707 = vadd.f32 %v1673, %v1679
    %v1708 = vadd.f32 %v1674, %v1679
    %v1709 = vadd.f32 %v1675, %v1679
    %v1710 = vadd.f32 %v1676, %v1679
    %v1711 = vadd.f32 %v1677, %v1679
    %v1712 = vmax.f32 %v1680, 0.0
    %v1713 = vmax.f32 %v1681, 0.0
    %v1714 = vmax.f32 %v1682, 0.0
    %v1715 = vmax.f32 %v1683, 0.0
    %v1716 = vmax.f32 %v1684, 0.0
    %v1717 = vmax.f32 %v1685, 0.0
    %v1718 = vmax.f32 %v1686, 0.0
    %v1719 = vmax.f32 %v1687, 0.0
    %v1720 = vmax.f32 %v1688, 0.0
    %v1721 = vmax.f32 %v1689, 0.0
    %v1722 = vmax.f32 %v1690, 0.0
    %v1723 = vmax.f32 %v1691, 0.0
    %v1724 = vmax.f32 %v1692, 0.0
    %v1725 = vmax.f32 %v1693, 0.0
    %v1726 = vmax.f32 %v1694, 0.0
    %v1727 = vmax.f32 %v1695, 0.0
    %v1728 = vmax.f32 %v1696, 0.0
    %v1729 = vmax.f32 %v1697, 0.0
    %v1730 = vmax.f32 %v1698, 0.0
    %v1731 = vmax.f32 %v1699, 0.0
    %v1732 = vmax.f32 %v1700, 0.0
    %v1733 = vmax.f32 %v1701, 0.0
    %v1734 = vmax.f32 %v1702, 0.0
    %v1735 = vmax.f32 %v1703, 0.0
    %v1736 = vmax.f32 %v1704, 0.0
    %v1737 = vmax.f32 %v1705, 0.0
    %v1738 = vmax.f32 %v1706, 0.0
    %v1739 = vmax.f32 %v1707, 0.0
    %v1740 = vmax.f32 %v1708, 0.0
    %v1741 = vmax.f32 %v1709, 0.0
    %v1742 = vmax.f32 %v1710, 0.0
    %v1743 = vmax.f32 %v1711, 0.0
    %1744 = vset.pattern.permute.xlu0 3
    %1745 = vperm.xlu0 %1744, %v391
    %v1746 = vpop.permute.xlu0 %1745
    %1748 = vset.pattern.permute.xlu0 3
    %1749 = vperm.xlu0 %1748, %v392
    %v1750 = vpop.permute.xlu0 %1749
    %1752 = vset.pattern.permute.xlu0 3
    %1753 = vperm.xlu0 %1752, %v393
    %v1754 = vpop.permute.xlu0 %1753
    %1756 = vset.pattern.permute.xlu0 3
    %1757 = vperm.xlu0 %1756, %v394
    %v1758 = vpop.permute.xlu0 %1757
    %1760 = vset.pattern.permute.xlu0 3
    %1761 = vperm.xlu0 %1760, %v395
    %v1762 = vpop.permute.xlu0 %1761
    %1764 = vset.pattern.permute.xlu0 3
    %1765 = vperm.xlu0 %1764, %v396
    %v1766 = vpop.permute.xlu0 %1765
    %1768 = vset.pattern.permute.xlu0 3
    %1769 = vperm.xlu0 %1768, %v397
    %v1770 = vpop.permute.xlu0 %1769
    %1772 = vset.pattern.permute.xlu0 3
    %1773 = vperm.xlu0 %1772, %v398
    %v1774 = vpop.permute.xlu0 %1773
    %1776 = vset.pattern.permute.xlu0 3
    %1777 = vperm.xlu0 %1776, %v399
    %v1778 = vpop.permute.xlu0 %1777
    %1780 = vset.pattern.permute.xlu0 3
    %1781 = vperm.xlu0 %1780, %v400
    %v1782 = vpop.permute.xlu0 %1781
    %1784 = vset.pattern.permute.xlu0 3
    %1785 = vperm.xlu0 %1784, %v401
    %v1786 = vpop.permute.xlu0 %1785
    %1788 = vset.pattern.permute.xlu0 3
    %1789 = vperm.xlu0 %1788, %v402
    %v1790 = vpop.permute.xlu0 %1789
    %1792 = vset.pattern.permute.xlu0 3
    %1793 = vperm.xlu0 %1792, %v403
    %v1794 = vpop.permute.xlu0 %1793
    %1796 = vset.pattern.permute.xlu0 3
    %1797 = vperm.xlu0 %1796, %v404
    %v1798 = vpop.permute.xlu0 %1797
    %1800 = vset.pattern.permute.xlu0 3
    %1801 = vperm.xlu0 %1800, %v405
    %v1802 = vpop.permute.xlu0 %1801
    %1804 = vset.pattern.permute.xlu0 3
    %1805 = vperm.xlu0 %1804, %v406
    %v1806 = vpop.permute.xlu0 %1805
    %1808 = vset.pattern.permute.xlu0 3
    %1809 = vperm.xlu0 %1808, %v407
    %v1810 = vpop.permute.xlu0 %1809
    %1812 = vset.pattern.permute.xlu0 3
    %1813 = vperm.xlu0 %1812, %v408
    %v1814 = vpop.permute.xlu0 %1813
    %1816 = vset.pattern.permute.xlu0 3
    %1817 = vperm.xlu0 %1816, %v409
    %v1818 = vpop.permute.xlu0 %1817
    %1820 = vset.pattern.permute.xlu0 3
    %1821 = vperm.xlu0 %1820, %v410
    %v1822 = vpop.permute.xlu0 %1821
    %1824 = vset.pattern.permute.xlu0 3
    %1825 = vperm.xlu0 %1824, %v411
    %v1826 = vpop.permute.xlu0 %1825
    %1828 = vset.pattern.permute.xlu0 3
    %1829 = vperm.xlu0 %1828, %v412
    %v1830 = vpop.permute.xlu0 %1829
    %1832 = vset.pattern.permute.xlu0 3
    %1833 = vperm.xlu0 %1832, %v413
    %v1834 = vpop.permute.xlu0 %1833
    %1836 = vset.pattern.permute.xlu0 3
    %1837 = vperm.xlu0 %1836, %v414
    %v1838 = vpop.permute.xlu0 %1837
    %1840 = vset.pattern.permute.xlu0 3
    %1841 = vperm.xlu0 %1840, %v415
    %v1842 = vpop.permute.xlu0 %1841
    %1844 = vset.pattern.permute.xlu0 3
    %1845 = vperm.xlu0 %1844, %v416
    %v1846 = vpop.permute.xlu0 %1845
    %1848 = vset.pattern.permute.xlu0 3
    %1849 = vperm.xlu0 %1848, %v417
    %v1850 = vpop.permute.xlu0 %1849
    %1852 = vset.pattern.permute.xlu0 3
    %1853 = vperm.xlu0 %1852, %v418
    %v1854 = vpop.permute.xlu0 %1853
    %1856 = vset.pattern.permute.xlu0 3
    %1857 = vperm.xlu0 %1856, %v419
    %v1858 = vpop.permute.xlu0 %1857
    %1860 = vset.pattern.permute.xlu0 3
    %1861 = vperm.xlu0 %1860, %v420
    %v1862 = vpop.permute.xlu0 %1861
    %1864 = vset.pattern.permute.xlu0 3
    %1865 = vperm.xlu0 %1864, %v421
    %v1866 = vpop.permute.xlu0 %1865
    %1868 = vset.pattern.permute.xlu0 3
    %1869 = vperm.xlu0 %1868, %v422
    %v1870 = vpop.permute.xlu0 %1869
    %v1872 = vmul.f32 %v1712, %v1746
    %v1873 = vmul.f32 %v1713, %v1750
    %v1874 = vmul.f32 %v1714, %v1754
    %v1875 = vmul.f32 %v1715, %v1758
    %v1876 = vmul.f32 %v1716, %v1762
    %v1877 = vmul.f32 %v1717, %v1766
    %v1878 = vmul.f32 %v1718, %v1770
    %v1879 = vmul.f32 %v1719, %v1774
    %v1880 = vmul.f32 %v1720, %v1778
    %v1881 = vmul.f32 %v1721, %v1782
    %v1882 = vmul.f32 %v1722, %v1786
    %v1883 = vmul.f32 %v1723, %v1790
    %v1884 = vmul.f32 %v1724, %v1794
    %v1885 = vmul.f32 %v1725, %v1798
    %v1886 = vmul.f32 %v1726, %v1802
    %v1887 = vmul.f32 %v1727, %v1806
    %v1888 = vmul.f32 %v1728, %v1810
    %v1889 = vmul.f32 %v1729, %v1814
    %v1890 = vmul.f32 %v1730, %v1818
    %v1891 = vmul.f32 %v1731, %v1822
    %v1892 = vmul.f32 %v1732, %v1826
    %v1893 = vmul.f32 %v1733, %v1830
    %v1894 = vmul.f32 %v1734, %v1834
    %v1895 = vmul.f32 %v1735, %v1838
    %v1896 = vmul.f32 %v1736, %v1842
    %v1897 = vmul.f32 %v1737, %v1846
    %v1898 = vmul.f32 %v1738, %v1850
    %v1899 = vmul.f32 %v1739, %v1854
    %v1900 = vmul.f32 %v1740, %v1858
    %v1901 = vmul.f32 %v1741, %v1862
    %v1902 = vmul.f32 %v1742, %v1866
    %v1903 = vmul.f32 %v1743, %v1870
    %v1904 = vadd.f32 %v1872, %v1873
    %v1905 = vadd.f32 %v1904, %v1874
    %v1906 = vadd.f32 %v1905, %v1875
    %v1907 = vadd.f32 %v1906, %v1876
    %v1908 = vadd.f32 %v1907, %v1877
    %v1909 = vadd.f32 %v1908, %v1878
    %v1910 = vadd.f32 %v1909, %v1879
    %v1911 = vadd.f32 %v1910, %v1880
    %v1912 = vadd.f32 %v1911, %v1881
    %v1913 = vadd.f32 %v1912, %v1882
    %v1914 = vadd.f32 %v1913, %v1883
    %v1915 = vadd.f32 %v1914, %v1884
    %v1916 = vadd.f32 %v1915, %v1885
    %v1917 = vadd.f32 %v1916, %v1886
    %v1918 = vadd.f32 %v1917, %v1887
    %v1919 = vadd.f32 %v1918, %v1888
    %v1920 = vadd.f32 %v1919, %v1889
    %v1921 = vadd.f32 %v1920, %v1890
    %v1922 = vadd.f32 %v1921, %v1891
    %v1923 = vadd.f32 %v1922, %v1892
    %v1924 = vadd.f32 %v1923, %v1893
    %v1925 = vadd.f32 %v1924, %v1894
    %v1926 = vadd.f32 %v1925, %v1895
    %v1927 = vadd.f32 %v1926, %v1896
    %v1928 = vadd.f32 %v1927, %v1897
    %v1929 = vadd.f32 %v1928, %v1898
    %v1930 = vadd.f32 %v1929, %v1899
    %v1931 = vadd.f32 %v1930, %v1900
    %v1932 = vadd.f32 %v1931, %v1901
    %v1933 = vadd.f32 %v1932, %v1902
    %v1934 = vadd.f32 %v1933, %v1903
    %v1935 = vrot.slane %v1934, 4
    %v1936 = vadd.f32 %v1934, %v1935
    %v1937 = vrot.slane %v1936, 2
    %v1938 = vadd.f32 %v1936, %v1937
    %v1939 = vrot.slane %v1938, 1
    %v1940 = vadd.f32 %v1938, %v1939
    %v1941 = vadd.f32 %v1511, %v1940
    %s1942 = sld [smem:[#allocation7 + $0x4]]
    %v1943 = vstv %s1942
    %v1944 = vmul.f32 %v61, %v1943
    %v1945 = vmul.f32 %v62, %v1943
    %v1946 = vmul.f32 %v63, %v1943
    %v1947 = vmul.f32 %v64, %v1943
    %v1948 = vmul.f32 %v65, %v1943
    %v1949 = vmul.f32 %v66, %v1943
    %v1950 = vmul.f32 %v67, %v1943
    %v1951 = vmul.f32 %v68, %v1943
    %v1952 = vmul.f32 %v69, %v1943
    %v1953 = vmul.f32 %v70, %v1943
    %v1954 = vmul.f32 %v71, %v1943
    %v1955 = vmul.f32 %v72, %v1943
    %v1956 = vmul.f32 %v73, %v1943
    %v1957 = vmul.f32 %v74, %v1943
    %v1958 = vmul.f32 %v75, %v1943
    %v1959 = vmul.f32 %v76, %v1943
    %v1960 = vmul.f32 %v77, %v1943
    %v1961 = vmul.f32 %v78, %v1943
    %v1962 = vmul.f32 %v79, %v1943
    %v1963 = vmul.f32 %v80, %v1943
    %v1964 = vmul.f32 %v81, %v1943
    %v1965 = vmul.f32 %v82, %v1943
    %v1966 = vmul.f32 %v83, %v1943
    %v1967 = vmul.f32 %v84, %v1943
    %v1968 = vmul.f32 %v85, %v1943
    %v1969 = vmul.f32 %v86, %v1943
    %v1970 = vmul.f32 %v87, %v1943
    %v1971 = vmul.f32 %v88, %v1943
    %v1972 = vmul.f32 %v89, %v1943
    %v1973 = vmul.f32 %v90, %v1943
    %v1974 = vmul.f32 %v91, %v1943
    %v1975 = vmul.f32 %v92, %v1943
    %s1976 = sld [smem:[#allocation7 + $0x9]]
    %v1977 = vstv %s1976
    %v1978 = vmul.f32 %v128, %v1977
    %v1979 = vmul.f32 %v129, %v1977
    %v1980 = vmul.f32 %v130, %v1977
    %v1981 = vmul.f32 %v131, %v1977
    %v1982 = vmul.f32 %v132, %v1977
    %v1983 = vmul.f32 %v133, %v1977
    %v1984 = vmul.f32 %v134, %v1977
    %v1985 = vmul.f32 %v135, %v1977
    %v1986 = vmul.f32 %v136, %v1977
    %v1987 = vmul.f32 %v137, %v1977
    %v1988 = vmul.f32 %v138, %v1977
    %v1989 = vmul.f32 %v139, %v1977
    %v1990 = vmul.f32 %v140, %v1977
    %v1991 = vmul.f32 %v141, %v1977
    %v1992 = vmul.f32 %v142, %v1977
    %v1993 = vmul.f32 %v143, %v1977
    %v1994 = vmul.f32 %v144, %v1977
    %v1995 = vmul.f32 %v145, %v1977
    %v1996 = vmul.f32 %v146, %v1977
    %v1997 = vmul.f32 %v147, %v1977
    %v1998 = vmul.f32 %v148, %v1977
    %v1999 = vmul.f32 %v149, %v1977
    %v2000 = vmul.f32 %v150, %v1977
    %v2001 = vmul.f32 %v151, %v1977
    %v2002 = vmul.f32 %v152, %v1977
    %v2003 = vmul.f32 %v153, %v1977
    %v2004 = vmul.f32 %v154, %v1977
    %v2005 = vmul.f32 %v155, %v1977
    %v2006 = vmul.f32 %v156, %v1977
    %v2007 = vmul.f32 %v157, %v1977
    %v2008 = vmul.f32 %v158, %v1977
    %v2009 = vmul.f32 %v159, %v1977
    %v2010 = vadd.f32 %v1944, %v1978
    %v2011 = vadd.f32 %v1945, %v1979
    %v2012 = vadd.f32 %v1946, %v1980
    %v2013 = vadd.f32 %v1947, %v1981
    %v2014 = vadd.f32 %v1948, %v1982
    %v2015 = vadd.f32 %v1949, %v1983
    %v2016 = vadd.f32 %v1950, %v1984
    %v2017 = vadd.f32 %v1951, %v1985
    %v2018 = vadd.f32 %v1952, %v1986
    %v2019 = vadd.f32 %v1953, %v1987
    %v2020 = vadd.f32 %v1954, %v1988
    %v2021 = vadd.f32 %v1955, %v1989
    %v2022 = vadd.f32 %v1956, %v1990
    %v2023 = vadd.f32 %v1957, %v1991
    %v2024 = vadd.f32 %v1958, %v1992
    %v2025 = vadd.f32 %v1959, %v1993
    %v2026 = vadd.f32 %v1960, %v1994
    %v2027 = vadd.f32 %v1961, %v1995
    %v2028 = vadd.f32 %v1962, %v1996
    %v2029 = vadd.f32 %v1963, %v1997
    %v2030 = vadd.f32 %v1964, %v1998
    %v2031 = vadd.f32 %v1965, %v1999
    %v2032 = vadd.f32 %v1966, %v2000
    %v2033 = vadd.f32 %v1967, %v2001
    %v2034 = vadd.f32 %v1968, %v2002
    %v2035 = vadd.f32 %v1969, %v2003
    %v2036 = vadd.f32 %v1970, %v2004
    %v2037 = vadd.f32 %v1971, %v2005
    %v2038 = vadd.f32 %v1972, %v2006
    %v2039 = vadd.f32 %v1973, %v2007
    %v2040 = vadd.f32 %v1974, %v2008
    %v2041 = vadd.f32 %v1975, %v2009
    %s2042 = sld [smem:[#allocation7 + $0xe]]
    %v2043 = vstv %s2042
    %v2044 = vmul.f32 %v227, %v2043
    %v2045 = vmul.f32 %v228, %v2043
    %v2046 = vmul.f32 %v229, %v2043
    %v2047 = vmul.f32 %v230, %v2043
    %v2048 = vmul.f32 %v231, %v2043
    %v2049 = vmul.f32 %v232, %v2043
    %v2050 = vmul.f32 %v233, %v2043
    %v2051 = vmul.f32 %v234, %v2043
    %v2052 = vmul.f32 %v235, %v2043
    %v2053 = vmul.f32 %v236, %v2043
    %v2054 = vmul.f32 %v237, %v2043
    %v2055 = vmul.f32 %v238, %v2043
    %v2056 = vmul.f32 %v239, %v2043
    %v2057 = vmul.f32 %v240, %v2043
    %v2058 = vmul.f32 %v241, %v2043
    %v2059 = vmul.f32 %v242, %v2043
    %v2060 = vmul.f32 %v243, %v2043
    %v2061 = vmul.f32 %v244, %v2043
    %v2062 = vmul.f32 %v245, %v2043
    %v2063 = vmul.f32 %v246, %v2043
    %v2064 = vmul.f32 %v247, %v2043
    %v2065 = vmul.f32 %v248, %v2043
    %v2066 = vmul.f32 %v249, %v2043
    %v2067 = vmul.f32 %v250, %v2043
    %v2068 = vmul.f32 %v251, %v2043
    %v2069 = vmul.f32 %v252, %v2043
    %v2070 = vmul.f32 %v253, %v2043
    %v2071 = vmul.f32 %v254, %v2043
    %v2072 = vmul.f32 %v255, %v2043
    %v2073 = vmul.f32 %v256, %v2043
    %v2074 = vmul.f32 %v257, %v2043
    %v2075 = vmul.f32 %v258, %v2043
    %v2076 = vadd.f32 %v2010, %v2044
    %v2077 = vadd.f32 %v2011, %v2045
    %v2078 = vadd.f32 %v2012, %v2046
    %v2079 = vadd.f32 %v2013, %v2047
    %v2080 = vadd.f32 %v2014, %v2048
    %v2081 = vadd.f32 %v2015, %v2049
    %v2082 = vadd.f32 %v2016, %v2050
    %v2083 = vadd.f32 %v2017, %v2051
    %v2084 = vadd.f32 %v2018, %v2052
    %v2085 = vadd.f32 %v2019, %v2053
    %v2086 = vadd.f32 %v2020, %v2054
    %v2087 = vadd.f32 %v2021, %v2055
    %v2088 = vadd.f32 %v2022, %v2056
    %v2089 = vadd.f32 %v2023, %v2057
    %v2090 = vadd.f32 %v2024, %v2058
    %v2091 = vadd.f32 %v2025, %v2059
    %v2092 = vadd.f32 %v2026, %v2060
    %v2093 = vadd.f32 %v2027, %v2061
    %v2094 = vadd.f32 %v2028, %v2062
    %v2095 = vadd.f32 %v2029, %v2063
    %v2096 = vadd.f32 %v2030, %v2064
    %v2097 = vadd.f32 %v2031, %v2065
    %v2098 = vadd.f32 %v2032, %v2066
    %v2099 = vadd.f32 %v2033, %v2067
    %v2100 = vadd.f32 %v2034, %v2068
    %v2101 = vadd.f32 %v2035, %v2069
    %v2102 = vadd.f32 %v2036, %v2070
    %v2103 = vadd.f32 %v2037, %v2071
    %v2104 = vadd.f32 %v2038, %v2072
    %v2105 = vadd.f32 %v2039, %v2073
    %v2106 = vadd.f32 %v2040, %v2074
    %v2107 = vadd.f32 %v2041, %v2075
    %s2108 = sld [smem:[#allocation8 + $0x4]]
    %v2109 = vstv %s2108
    %v2110 = vadd.f32 %v2076, %v2109
    %v2111 = vadd.f32 %v2077, %v2109
    %v2112 = vadd.f32 %v2078, %v2109
    %v2113 = vadd.f32 %v2079, %v2109
    %v2114 = vadd.f32 %v2080, %v2109
    %v2115 = vadd.f32 %v2081, %v2109
    %v2116 = vadd.f32 %v2082, %v2109
    %v2117 = vadd.f32 %v2083, %v2109
    %v2118 = vadd.f32 %v2084, %v2109
    %v2119 = vadd.f32 %v2085, %v2109
    %v2120 = vadd.f32 %v2086, %v2109
    %v2121 = vadd.f32 %v2087, %v2109
    %v2122 = vadd.f32 %v2088, %v2109
    %v2123 = vadd.f32 %v2089, %v2109
    %v2124 = vadd.f32 %v2090, %v2109
    %v2125 = vadd.f32 %v2091, %v2109
    %v2126 = vadd.f32 %v2092, %v2109
    %v2127 = vadd.f32 %v2093, %v2109
    %v2128 = vadd.f32 %v2094, %v2109
    %v2129 = vadd.f32 %v2095, %v2109
    %v2130 = vadd.f32 %v2096, %v2109
    %v2131 = vadd.f32 %v2097, %v2109
    %v2132 = vadd.f32 %v2098, %v2109
    %v2133 = vadd.f32 %v2099, %v2109
    %v2134 = vadd.f32 %v2100, %v2109
    %v2135 = vadd.f32 %v2101, %v2109
    %v2136 = vadd.f32 %v2102, %v2109
    %v2137 = vadd.f32 %v2103, %v2109
    %v2138 = vadd.f32 %v2104, %v2109
    %v2139 = vadd.f32 %v2105, %v2109
    %v2140 = vadd.f32 %v2106, %v2109
    %v2141 = vadd.f32 %v2107, %v2109
    %v2142 = vmax.f32 %v2110, 0.0
    %v2143 = vmax.f32 %v2111, 0.0
    %v2144 = vmax.f32 %v2112, 0.0
    %v2145 = vmax.f32 %v2113, 0.0
    %v2146 = vmax.f32 %v2114, 0.0
    %v2147 = vmax.f32 %v2115, 0.0
    %v2148 = vmax.f32 %v2116, 0.0
    %v2149 = vmax.f32 %v2117, 0.0
    %v2150 = vmax.f32 %v2118, 0.0
    %v2151 = vmax.f32 %v2119, 0.0
    %v2152 = vmax.f32 %v2120, 0.0
    %v2153 = vmax.f32 %v2121, 0.0
    %v2154 = vmax.f32 %v2122, 0.0
    %v2155 = vmax.f32 %v2123, 0.0
    %v2156 = vmax.f32 %v2124, 0.0
    %v2157 = vmax.f32 %v2125, 0.0
    %v2158 = vmax.f32 %v2126, 0.0
    %v2159 = vmax.f32 %v2127, 0.0
    %v2160 = vmax.f32 %v2128, 0.0
    %v2161 = vmax.f32 %v2129, 0.0
    %v2162 = vmax.f32 %v2130, 0.0
    %v2163 = vmax.f32 %v2131, 0.0
    %v2164 = vmax.f32 %v2132, 0.0
    %v2165 = vmax.f32 %v2133, 0.0
    %v2166 = vmax.f32 %v2134, 0.0
    %v2167 = vmax.f32 %v2135, 0.0
    %v2168 = vmax.f32 %v2136, 0.0
    %v2169 = vmax.f32 %v2137, 0.0
    %v2170 = vmax.f32 %v2138, 0.0
    %v2171 = vmax.f32 %v2139, 0.0
    %v2172 = vmax.f32 %v2140, 0.0
    %v2173 = vmax.f32 %v2141, 0.0
    %2174 = vset.pattern.permute.xlu0 4
    %2175 = vperm.xlu0 %2174, %v391
    %v2176 = vpop.permute.xlu0 %2175
    %2178 = vset.pattern.permute.xlu0 4
    %2179 = vperm.xlu0 %2178, %v392
    %v2180 = vpop.permute.xlu0 %2179
    %2182 = vset.pattern.permute.xlu0 4
    %2183 = vperm.xlu0 %2182, %v393
    %v2184 = vpop.permute.xlu0 %2183
    %2186 = vset.pattern.permute.xlu0 4
    %2187 = vperm.xlu0 %2186, %v394
    %v2188 = vpop.permute.xlu0 %2187
    %2190 = vset.pattern.permute.xlu0 4
    %2191 = vperm.xlu0 %2190, %v395
    %v2192 = vpop.permute.xlu0 %2191
    %2194 = vset.pattern.permute.xlu0 4
    %2195 = vperm.xlu0 %2194, %v396
    %v2196 = vpop.permute.xlu0 %2195
    %2198 = vset.pattern.permute.xlu0 4
    %2199 = vperm.xlu0 %2198, %v397
    %v2200 = vpop.permute.xlu0 %2199
    %2202 = vset.pattern.permute.xlu0 4
    %2203 = vperm.xlu0 %2202, %v398
    %v2204 = vpop.permute.xlu0 %2203
    %2206 = vset.pattern.permute.xlu0 4
    %2207 = vperm.xlu0 %2206, %v399
    %v2208 = vpop.permute.xlu0 %2207
    %2210 = vset.pattern.permute.xlu0 4
    %2211 = vperm.xlu0 %2210, %v400
    %v2212 = vpop.permute.xlu0 %2211
    %2214 = vset.pattern.permute.xlu0 4
    %2215 = vperm.xlu0 %2214, %v401
    %v2216 = vpop.permute.xlu0 %2215
    %2218 = vset.pattern.permute.xlu0 4
    %2219 = vperm.xlu0 %2218, %v402
    %v2220 = vpop.permute.xlu0 %2219
    %2222 = vset.pattern.permute.xlu0 4
    %2223 = vperm.xlu0 %2222, %v403
    %v2224 = vpop.permute.xlu0 %2223
    %2226 = vset.pattern.permute.xlu0 4
    %2227 = vperm.xlu0 %2226, %v404
    %v2228 = vpop.permute.xlu0 %2227
    %2230 = vset.pattern.permute.xlu0 4
    %2231 = vperm.xlu0 %2230, %v405
    %v2232 = vpop.permute.xlu0 %2231
    %2234 = vset.pattern.permute.xlu0 4
    %2235 = vperm.xlu0 %2234, %v406
    %v2236 = vpop.permute.xlu0 %2235
    %2238 = vset.pattern.permute.xlu0 4
    %2239 = vperm.xlu0 %2238, %v407
    %v2240 = vpop.permute.xlu0 %2239
    %2242 = vset.pattern.permute.xlu0 4
    %2243 = vperm.xlu0 %2242, %v408
    %v2244 = vpop.permute.xlu0 %2243
    %2246 = vset.pattern.permute.xlu0 4
    %2247 = vperm.xlu0 %2246, %v409
    %v2248 = vpop.permute.xlu0 %2247
    %2250 = vset.pattern.permute.xlu0 4
    %2251 = vperm.xlu0 %2250, %v410
    %v2252 = vpop.permute.xlu0 %2251
    %2254 = vset.pattern.permute.xlu0 4
    %2255 = vperm.xlu0 %2254, %v411
    %v2256 = vpop.permute.xlu0 %2255
    %2258 = vset.pattern.permute.xlu0 4
    %2259 = vperm.xlu0 %2258, %v412
    %v2260 = vpop.permute.xlu0 %2259
    %2262 = vset.pattern.permute.xlu0 4
    %2263 = vperm.xlu0 %2262, %v413
    %v2264 = vpop.permute.xlu0 %2263
    %2266 = vset.pattern.permute.xlu0 4
    %2267 = vperm.xlu0 %2266, %v414
    %v2268 = vpop.permute.xlu0 %2267
    %2270 = vset.pattern.permute.xlu0 4
    %2271 = vperm.xlu0 %2270, %v415
    %v2272 = vpop.permute.xlu0 %2271
    %2274 = vset.pattern.permute.xlu0 4
    %2275 = vperm.xlu0 %2274, %v416
    %v2276 = vpop.permute.xlu0 %2275
    %2278 = vset.pattern.permute.xlu0 4
    %2279 = vperm.xlu0 %2278, %v417
    %v2280 = vpop.permute.xlu0 %2279
    %2282 = vset.pattern.permute.xlu0 4
    %2283 = vperm.xlu0 %2282, %v418
    %v2284 = vpop.permute.xlu0 %2283
    %2286 = vset.pattern.permute.xlu0 4
    %2287 = vperm.xlu0 %2286, %v419
    %v2288 = vpop.permute.xlu0 %2287
    %2290 = vset.pattern.permute.xlu0 4
    %2291 = vperm.xlu0 %2290, %v420
    %v2292 = vpop.permute.xlu0 %2291
    %2294 = vset.pattern.permute.xlu0 4
    %2295 = vperm.xlu0 %2294, %v421
    %v2296 = vpop.permute.xlu0 %2295
    %2298 = vset.pattern.permute.xlu0 4
    %2299 = vperm.xlu0 %2298, %v422
    %v2300 = vpop.permute.xlu0 %2299
    %v2302 = vmul.f32 %v2142, %v2176
    %v2303 = vmul.f32 %v2143, %v2180
    %v2304 = vmul.f32 %v2144, %v2184
    %v2305 = vmul.f32 %v2145, %v2188
    %v2306 = vmul.f32 %v2146, %v2192
    %v2307 = vmul.f32 %v2147, %v2196
    %v2308 = vmul.f32 %v2148, %v2200
    %v2309 = vmul.f32 %v2149, %v2204
    %v2310 = vmul.f32 %v2150, %v2208
    %v2311 = vmul.f32 %v2151, %v2212
    %v2312 = vmul.f32 %v2152, %v2216
    %v2313 = vmul.f32 %v2153, %v2220
    %v2314 = vmul.f32 %v2154, %v2224
    %v2315 = vmul.f32 %v2155, %v2228
    %v2316 = vmul.f32 %v2156, %v2232
    %v2317 = vmul.f32 %v2157, %v2236
    %v2318 = vmul.f32 %v2158, %v2240
    %v2319 = vmul.f32 %v2159, %v2244
    %v2320 = vmul.f32 %v2160, %v2248
    %v2321 = vmul.f32 %v2161, %v2252
    %v2322 = vmul.f32 %v2162, %v2256
    %v2323 = vmul.f32 %v2163, %v2260
    %v2324 = vmul.f32 %v2164, %v2264
    %v2325 = vmul.f32 %v2165, %v2268
    %v2326 = vmul.f32 %v2166, %v2272
    %v2327 = vmul.f32 %v2167, %v2276
    %v2328 = vmul.f32 %v2168, %v2280
    %v2329 = vmul.f32 %v2169, %v2284
    %v2330 = vmul.f32 %v2170, %v2288
    %v2331 = vmul.f32 %v2171, %v2292
    %v2332 = vmul.f32 %v2172, %v2296
    %v2333 = vmul.f32 %v2173, %v2300
    %v2334 = vadd.f32 %v2302, %v2303
    %v2335 = vadd.f32 %v2334, %v2304
    %v2336 = vadd.f32 %v2335, %v2305
    %v2337 = vadd.f32 %v2336, %v2306
    %v2338 = vadd.f32 %v2337, %v2307
    %v2339 = vadd.f32 %v2338, %v2308
    %v2340 = vadd.f32 %v2339, %v2309
    %v2341 = vadd.f32 %v2340, %v2310
    %v2342 = vadd.f32 %v2341, %v2311
    %v2343 = vadd.f32 %v2342, %v2312
    %v2344 = vadd.f32 %v2343, %v2313
    %v2345 = vadd.f32 %v2344, %v2314
    %v2346 = vadd.f32 %v2345, %v2315
    %v2347 = vadd.f32 %v2346, %v2316
    %v2348 = vadd.f32 %v2347, %v2317
    %v2349 = vadd.f32 %v2348, %v2318
    %v2350 = vadd.f32 %v2349, %v2319
    %v2351 = vadd.f32 %v2350, %v2320
    %v2352 = vadd.f32 %v2351, %v2321
    %v2353 = vadd.f32 %v2352, %v2322
    %v2354 = vadd.f32 %v2353, %v2323
    %v2355 = vadd.f32 %v2354, %v2324
    %v2356 = vadd.f32 %v2355, %v2325
    %v2357 = vadd.f32 %v2356, %v2326
    %v2358 = vadd.f32 %v2357, %v2327
    %v2359 = vadd.f32 %v2358, %v2328
    %v2360 = vadd.f32 %v2359, %v2329
    %v2361 = vadd.f32 %v2360, %v2330
    %v2362 = vadd.f32 %v2361, %v2331
    %v2363 = vadd.f32 %v2362, %v2332
    %v2364 = vadd.f32 %v2363, %v2333
    %v2365 = vrot.slane %v2364, 4
    %v2366 = vadd.f32 %v2364, %v2365
    %v2367 = vrot.slane %v2366, 2
    %v2368 = vadd.f32 %v2366, %v2367
    %v2369 = vrot.slane %v2368, 1
    %v2370 = vadd.f32 %v2368, %v2369
    %v2371 = vadd.f32 %v1941, %v2370
    %s2372 = sld [smem:[#allocation2]]
    %v2373 = vstv %s2372
    %v2374 = vadd.f32 %v2371, %v2373
    %2375 = vst [vmem:[#allocation10] sm:$0x1] %v2374
    // Predicated region
    $region34: #{tpu_custom_call.1} parent=1 // pred_check
      _
    $region35: #{tpu_custom_call.1} parent=1 // pred_check_branch
      %2377 = sbr.rel (0) target = $region37
    $region36: #{tpu_custom_call.1} parent=1 // pred_region
      %s2379 = ssub.s32 16, 16
      %2380 = vsyncadd [#allocation5], %s2379
      %s2382 = sshll.u32 [#allocation10], 4
      %s2383 = int_to_ptr.vmem [resolvable:$true] %s2382
      %2385 = dma.vmem_to_hbm [thread:$0]  %s2383, 16, %s5, [#allocation5]
    $region37: #{tpu_custom_call.1} parent=1 // pred_fallthru
      _
    // Predicated region
    $region38: #{tpu_custom_call.1} parent=1 // pred_check
      _
    $region39: #{tpu_custom_call.1} parent=1 // pred_check_branch
      %2387 = sbr.rel (0) target = $region41
    $region40: #{tpu_custom_call.1} parent=1 // pred_region
      %2388 = dma.done [#allocation5], 16
    $region41: #{tpu_custom_call.1} parent=1 // pred_fallthru
      _
    %2389 = vsyncpa [#allocation4], 1
    %2390 = vsyncpa [#allocation5], 1
    %2391 = vsyncpa [#allocation6], 1
    %2392 = vsyncpa [#allocation9], 1

</llo_original>
